<compile_context>
chip_gen: v7x
topology: tpu7x:2x2x1
jax: 0.10.0
libtpu: 0.0.40
codegen_flags: <defaults>
</compile_context>

<pallas_src>
import jax
import jax.numpy as jnp
from jax.experimental import pallas as pl
from jax.experimental.pallas import tpu as pltpu


def lhuc_kernel(x_ref, w1_ref, b1_ref, w2_ref, b2_ref, o_ref):
    # x_ref: (tm, D) caller dtype; w1: (D, H) bf16; b1: (1, H) f32;
    # w2: (H, D) bf16; b2: (1, D) f32; o_ref: (tm, D) out dtype.
    x = x_ref[...].astype(jnp.bfloat16)  # in-kernel cast (VPU, hidden under DMA/MXU slack)
    # First linear: bf16 MXU operands, f32 accumulation, f32 bias add.
    h = jnp.dot(x, w1_ref[...], preferred_element_type=jnp.float32) + b1_ref[...]
    # SiLU: h * sigmoid(h); exp on EUP, approx reciprocal on EUP (separate VLIW slot).
    s = h * pl.reciprocal(1.0 + jnp.exp(-h), approx=True)
    # Second linear: cast only the MXU operand to bf16, accumulate in f32.
    y = jnp.dot(s.astype(jnp.bfloat16), w2_ref[...],
                preferred_element_type=jnp.float32) + b2_ref[...]
    # Final sigmoid, lane-dense store directly in the output dtype.
    o_ref[...] = pl.reciprocal(1.0 + jnp.exp(-y), approx=True).astype(o_ref.dtype)


def lhuc_forward(x, w1, b1, w2, b2, *, tm=512, out_dtype=None):
    """x: [M, D]; w1: [D, H]; b1: [1, H]; w2: [H, D]; b2: [1, D] (H = D//4)."""
    M, D = x.shape
    H = w1.shape[1]
    out_dtype = x.dtype if out_dtype is None else out_dtype

    # MXU wants bf16 weights; these casts are no-ops if the caller already
    # holds (cached) bf16 params — recommended when LHUC runs every step.
    w1 = w1.astype(jnp.bfloat16)
    w2 = w2.astype(jnp.bfloat16)
    b1 = b1.astype(jnp.float32).reshape(1, H)
    b2 = b2.astype(jnp.float32).reshape(1, D)

    # Row tile: clamp to M for tiny inputs (block == full dim is always legal).
    tm = min(tm, M)
    grid = (pl.cdiv(M, tm),)  # ragged last block: OOB writes are masked, rows independent

    weight_mode = pl.Buffered(1)  # grid-invariant blocks don't need double buffers

    out = pl.pallas_call(
        lhuc_kernel,
        out_shape=jax.ShapeDtypeStruct((M, D), out_dtype),
        grid_spec=pltpu.PrefetchScalarGridSpec(
            num_scalar_prefetch=0,
            grid=grid,
            in_specs=[
                pl.BlockSpec((tm, D), lambda i: (i, 0)),                            # x rows
                pl.BlockSpec((D, H), lambda i: (0, 0), pipeline_mode=weight_mode),  # W1 (resident)
                pl.BlockSpec((1, H), lambda i: (0, 0), pipeline_mode=weight_mode),  # b1
                pl.BlockSpec((H, D), lambda i: (0, 0), pipeline_mode=weight_mode),  # W2 (resident)
                pl.BlockSpec((1, D), lambda i: (0, 0), pipeline_mode=weight_mode),  # b2
            ],
            out_specs=pl.BlockSpec((tm, D), lambda i: (i, 0)),
        ),
        compiler_params=pltpu.CompilerParams(
            dimension_semantics=("parallel",),
            vmem_limit_bytes=64 * 1024 * 1024,
        ),
    )(x, w1, b1, w2, b2)

    # TODO(synk): for production D (weights-resident stops fitting around
    # D ~ 5-6k on v7x's 64 MiB VMEM) tile W2 over output-D columns and tile the
    # first matmul's D-contraction with an f32 h accumulator in VMEM scratch
    # (pl.when init/finalize) instead of keeping both weights fully resident.
    return out


def lhuc_reference(x, w1, b1, w2, b2):
    h = x @ w1 + b1
    s = h * jax.nn.sigmoid(h)
    return jax.nn.sigmoid(s @ w2 + b2)


if __name__ == "__main__":
    # dim=512 -> hidden=128 keeps every matmul / store lane-dense.
    # M=512 with tm=128 gives a 4-step parallel grid (>=2 steps per v7x core).
    M, dim = 512, 512
    hidden = dim // 4

    key = jax.random.PRNGKey(0)
    kx, k1, kb1, k2, kb2 = jax.random.split(key, 5)

    x = jax.random.normal(kx, (M, dim), dtype=jnp.float32)

    # nn.Linear stores weight as [out, in]; init that way, transpose to [in, out].
    w1_t = jax.random.normal(k1, (hidden, dim), dtype=jnp.float32) * 0.05
    b1 = jax.random.normal(kb1, (1, hidden), dtype=jnp.float32) * 0.05
    w2_t = jax.random.normal(k2, (dim, hidden), dtype=jnp.float32) * 0.05
    b2 = jax.random.normal(kb2, (1, dim), dtype=jnp.float32) * 0.05
    w1, w2 = w1_t.T, w2_t.T

    # Cache the bf16 weight casts once (not per call).
    w1_bf = jnp.asarray(w1, dtype=jnp.bfloat16)
    w2_bf = jnp.asarray(w2, dtype=jnp.bfloat16)

    out = lhuc_forward(x, w1_bf, b1, w2_bf, b2, tm=128)
    out = jax.block_until_ready(out)

    ref = lhuc_reference(x, w1, b1, w2, b2)
    assert out.shape == (M, dim)
    assert out.dtype == x.dtype
    # bf16 MXU operands / bf16 weights with f32 accumulation vs. pure-f32 reference.
    assert jnp.allclose(out, ref, atol=2e-2, rtol=2e-2), "mismatch vs reference"

    print("KERNEL_OK")
</pallas_src>

<mosaic_0001>
module attributes {stable_mosaic.version = 11 : i64} {
  func.func @lhuc_kernel(%arg0: i32, %arg1: memref<128x512xf32, #tpu.memory_space<vmem>>, %arg2: memref<512x128xbf16, #tpu.memory_space<vmem>>, %arg3: memref<1x128xf32, #tpu.memory_space<vmem>>, %arg4: memref<128x512xbf16, #tpu.memory_space<vmem>>, %arg5: memref<1x512xf32, #tpu.memory_space<vmem>>, %arg6: memref<128x512xf32, #tpu.memory_space<vmem>>) attributes {dimension_semantics = [#tpu.dimension_semantics<parallel>], iteration_bounds = array<i64: 4>, scalar_prefetch = 0 : i64, scratch_operands = 0 : i64, tpu.core_type = #tpu.core_type<tc>, window_params = [{transform_indices = @transform_0, window_bounds = array<i64: 128, 512>}, {pipeline_mode = #tpu.pipeline_mode<synchronous>, transform_indices = @transform_1, window_bounds = array<i64: 512, 128>}, {pipeline_mode = #tpu.pipeline_mode<synchronous>, transform_indices = @transform_2, window_bounds = array<i64: 1, 128>}, {pipeline_mode = #tpu.pipeline_mode<synchronous>, transform_indices = @transform_3, window_bounds = array<i64: 128, 512>}, {pipeline_mode = #tpu.pipeline_mode<synchronous>, transform_indices = @transform_4, window_bounds = array<i64: 1, 512>}, {transform_indices = @transform_5, window_bounds = array<i64: 128, 512>}]} {
    %c0 = arith.constant 0 : index
    %c0_0 = arith.constant 0 : index
    %0 = vector.load %arg1[%c0, %c0_0] : memref<128x512xf32, #tpu.memory_space<vmem>>, vector<128x512xf32>
    %1 = arith.truncf %0 : vector<128x512xf32> to vector<128x512xbf16>
    %c0_1 = arith.constant 0 : index
    %c0_2 = arith.constant 0 : index
    %2 = vector.load %arg2[%c0_1, %c0_2] : memref<512x128xbf16, #tpu.memory_space<vmem>>, vector<512x128xbf16>
    %cst = arith.constant dense<0.000000e+00> : vector<128x128xf32>
    %3 = tpu.matmul %1, %2, %cst {dimension_numbers = #tpu.dot_dimension_numbers<[1], [0], [0], [1], [0, 0, 1, 1], [], []>} : vector<128x512xbf16>, vector<512x128xbf16>, vector<128x128xf32> -> vector<128x128xf32>
    %c0_3 = arith.constant 0 : index
    %c0_4 = arith.constant 0 : index
    %4 = vector.load %arg3[%c0_3, %c0_4] : memref<1x128xf32, #tpu.memory_space<vmem>>, vector<1x128xf32>
    %5 = vector.broadcast %4 : vector<1x128xf32> to vector<128x128xf32>
    %6 = arith.addf %3, %5 : vector<128x128xf32>
    %cst_5 = arith.constant 0.000000e+00 : f32
    %7 = vector.broadcast %cst_5 : f32 to vector<128x128xf32>
    %8 = arith.subf %7, %6 : vector<128x128xf32>
    %9 = math.exp %8 : vector<128x128xf32>
    %cst_6 = arith.constant 1.000000e+00 : f32
    %10 = vector.broadcast %cst_6 : f32 to vector<128x128xf32>
    %11 = arith.addf %10, %9 : vector<128x128xf32>
    %12 = tpu.reciprocal %11 {approx = true} : vector<128x128xf32> -> vector<128x128xf32>
    %13 = arith.mulf %6, %12 : vector<128x128xf32>
    %14 = arith.truncf %13 : vector<128x128xf32> to vector<128x128xbf16>
    %c0_7 = arith.constant 0 : index
    %c0_8 = arith.constant 0 : index
    %15 = vector.load %arg4[%c0_7, %c0_8] : memref<128x512xbf16, #tpu.memory_space<vmem>>, vector<128x512xbf16>
    %cst_9 = arith.constant dense<0.000000e+00> : vector<128x512xf32>
    %16 = tpu.matmul %14, %15, %cst_9 {dimension_numbers = #tpu.dot_dimension_numbers<[1], [0], [0], [1], [0, 0, 1, 1], [], []>} : vector<128x128xbf16>, vector<128x512xbf16>, vector<128x512xf32> -> vector<128x512xf32>
    %c0_10 = arith.constant 0 : index
    %c0_11 = arith.constant 0 : index
    %17 = vector.load %arg5[%c0_10, %c0_11] : memref<1x512xf32, #tpu.memory_space<vmem>>, vector<1x512xf32>
    %18 = vector.broadcast %17 : vector<1x512xf32> to vector<128x512xf32>
    %19 = arith.addf %16, %18 : vector<128x512xf32>
    %cst_12 = arith.constant 0.000000e+00 : f32
    %20 = vector.broadcast %cst_12 : f32 to vector<128x512xf32>
    %21 = arith.subf %20, %19 : vector<128x512xf32>
    %22 = math.exp %21 : vector<128x512xf32>
    %cst_13 = arith.constant 1.000000e+00 : f32
    %23 = vector.broadcast %cst_13 : f32 to vector<128x512xf32>
    %24 = arith.addf %23, %22 : vector<128x512xf32>
    %25 = tpu.reciprocal %24 {approx = true} : vector<128x512xf32> -> vector<128x512xf32>
    %c0_14 = arith.constant 0 : index
    %c0_15 = arith.constant 0 : index
    %26 = vector.load %arg6[%c0_14, %c0_15] : memref<128x512xf32, #tpu.memory_space<vmem>>, vector<128x512xf32>
    tpu.vector_store %arg6[%c0_14, %c0_15], %25 {strides = array<i32>} : memref<128x512xf32, #tpu.memory_space<vmem>>, vector<128x512xf32>,
    return
  }
  func.func @transform_0(%arg0: i32) -> (i32, i32) {
    %c0_i32 = arith.constant 0 : i32
    %c0_i32_0 = arith.constant 0 : i32
    return %arg0, %c0_i32 : i32, i32
  }
  func.func @transform_1(%arg0: i32) -> (i32, i32) {
    %c0_i32 = arith.constant 0 : i32
    %c0_i32_0 = arith.constant 0 : i32
    %c0_i32_1 = arith.constant 0 : i32
    return %c0_i32, %c0_i32_0 : i32, i32
  }
  func.func @transform_2(%arg0: i32) -> (i32, i32) {
    %c0_i32 = arith.constant 0 : i32
    %c0_i32_0 = arith.constant 0 : i32
    %c0_i32_1 = arith.constant 0 : i32
    return %c0_i32, %c0_i32_0 : i32, i32
  }
  func.func @transform_3(%arg0: i32) -> (i32, i32) {
    %c0_i32 = arith.constant 0 : i32
    %c0_i32_0 = arith.constant 0 : i32
    %c0_i32_1 = arith.constant 0 : i32
    return %c0_i32, %c0_i32_0 : i32, i32
  }
  func.func @transform_4(%arg0: i32) -> (i32, i32) {
    %c0_i32 = arith.constant 0 : i32
    %c0_i32_0 = arith.constant 0 : i32
    %c0_i32_1 = arith.constant 0 : i32
    return %c0_i32, %c0_i32_0 : i32, i32
  }
  func.func @transform_5(%arg0: i32) -> (i32, i32) {
    %c0_i32 = arith.constant 0 : i32
    %c0_i32_0 = arith.constant 0 : i32
    return %arg0, %c0_i32 : i32, i32
  }
}

</mosaic_0001>

<llo_original>
// kernel: tpu_custom_call.1
$region0: #{tpu_custom_call.1}
  #allocation0 [shape = 'u32[]', space=smem, size = 0x4, offset = 0x4, fixed_abs, tag = 'smem constant byte address 0x4 - core index']
  #allocation1 [shape = 'u32[144,128]{1,0:T(1,128)}', space=vmem, size = 0x12000, scoped, tag = 'internal scratch']
  %s0 = inlined_call_operand.hbm [shape: f32[512,512], index: 0, kind: input, shape index: {}]
  %s1 = inlined_call_operand.hbm [shape: bf16[512,128], index: 1, kind: input, shape index: {}]
  %s2 = inlined_call_operand.hbm [shape: f32[1,128], index: 2, kind: input, shape index: {}]
  %s3 = inlined_call_operand.hbm [shape: bf16[128,512], index: 3, kind: input, shape index: {}]
  %s4 = inlined_call_operand.hbm [shape: f32[1,512], index: 4, kind: input, shape index: {}]
  %s5 = inlined_call_operand.hbm [shape: f32[512,512], index: 5, kind: output, shape index: {}]
  %s6 = sld [smem:[#allocation0]]
  $region73: #{tpu_custom_call.1} parent=0
    _
  %s8 = ssub.s32 1, %s6
  %s9 = scalar_select 0, %s8, %s6
  $region1: #{tpu_custom_call.1} parent=0
    #allocation2 [shape = 'u8[524288]{0}', space=vmem, size = 0x80000, scoped, tag = 'input window, operand 0']
    #allocation3 [shape = 's32[2]{0}', space=sflag, size = 0x8, scoped, tag = 'scoped memory for tpu_custom_call.1']
    #allocation4 [shape = 's32[2]{0}', space=sflag, size = 0x8, scoped, tag = 'scoped memory for tpu_custom_call.1']
    #allocation5 [shape = 'u8[131072]{0}', space=vmem, size = 0x20000, scoped, tag = 'input window, operand 1, single buffered']
    #allocation6 [shape = 's32[1]{0}', space=sflag, size = 0x4, scoped, tag = 'scoped memory for tpu_custom_call.1']
    #allocation7 [shape = 'u8[512]{0}', space=vmem, size = 0x400, scoped, tag = 'input window, operand 2, single buffered']
    #allocation8 [shape = 'u8[131072]{0}', space=vmem, size = 0x20000, scoped, tag = 'input window, operand 3, single buffered']
    #allocation9 [shape = 's32[1]{0}', space=sflag, size = 0x4, scoped, tag = 'scoped memory for tpu_custom_call.1']
    #allocation10 [shape = 'u8[2048]{0}', space=vmem, size = 0x800, scoped, tag = 'input window, operand 4, single buffered']
    #allocation11 [shape = 'u8[524288]{0}', space=vmem, size = 0x80000, scoped, tag = 'output window, operand 0']
    %10 = vsyncpa [#allocation3], 0
    %s11 = scalar_lea.sflag [#allocation3], 1
    %12 = vsyncpa %s11, 0
    %13 = vsyncpa [#allocation6], 0
    %14 = vsyncpa [#allocation9], 0
    %15 = vsyncpa [#allocation4], 0
    %s16 = scalar_lea.sflag [#allocation4], 1
    %17 = vsyncpa %s16, 0
    loop: start=0, step=1, limit=6
    $region2: #{tpu_custom_call.1} parent=1 // loop_pre_header
      _
    $region3: #{tpu_custom_call.1} parent=1 // loop_header
      %s19 = sphi 0, %s23
      %p20 = scmp.ge.s32.totalorder %s19, 6
      %s29 = sphi 0, %s31
      %s32 = sphi 0, %s29
      %s33 = sphi 0, %s32
      %s49 = sphi 0, %s33
      %s53 = sphi 0, %s53
      %s55 = sphi 0, %s53
      %s56 = sphi 0, %s55
      %s70 = sphi 0, %s56
      %s74 = sphi 0, %s74
      %s76 = sphi 0, %s74
      %s77 = sphi 0, %s76
      %s91 = sphi 0, %s77
      %s95 = sphi 0, %s95
      %s97 = sphi 0, %s95
      %s98 = sphi 0, %s97
      %s112 = sphi 0, %s98
      %s116 = sphi 0, %s116
      %s118 = sphi 0, %s116
      %s119 = sphi 0, %s118
      %s133 = sphi 0, %s119
      %s139 = sphi 0, %s141
      %s142 = sphi 0, %s139
      %s143 = sphi 0, %s142
      %s159 = sphi 0, %s143
    $region4: #{tpu_custom_call.1} parent=1 // loop_header_branch
      %22 = sbr.rel (%p20) target = $region8
    $region5: #{tpu_custom_call.1} parent=1 // loop_body
      %s24 = ssub.s32 %s19, 1
      %s25 = ssub.s32 %s19, 2
      %s26 = sadd.s32 %s19, 1
      %s27 = ssub.s32 %s19, %s26
      %p28 = scmp.eq.s32.totalorder %s27, 0
      %s30 = sadd.s32 %s29, 1
      %s31 = scalar_select %p28, %s29, %s30
      %p34 = pneg %p28
      %p35 = scmp.eq.s32.totalorder %s19, 3
      %p36 = por %p34, %p35
      %p37 = scmp.ne.s32.totalorder %s29, %s32
      %p38 = scmp.eq.s32.totalorder %s19, 0
      %p39 = por %p37, %p38
      %p40 = scmp.ne.s32.totalorder %s29, %s32
      %p41 = scmp.eq.s32.totalorder %s24, 3
      %p42 = por %p40, %p41
      %p43 = scmp.ne.s32.totalorder %s32, %s33
      %p44 = scmp.eq.s32.totalorder %s24, 0
      %p45 = por %p43, %p44
      %p46 = scmp.ne.s32.totalorder %s32, %s33
      %p47 = scmp.eq.s32.totalorder %s25, 3
      %p48 = por %p46, %p47
      %p50 = scmp.ne.s32.totalorder %s33, %s49
      %p51 = scmp.eq.s32.totalorder %s25, 0
      %p52 = por %p50, %p51
      %s54 = sadd.s32 %s53, 1
      %p57 = scmp.eq.s32.totalorder %s19, 3
      %p58 = scmp.ne.s32.totalorder %s53, %s55
      %p59 = scmp.eq.s32.totalorder %s19, 0
      %p60 = por %p58, %p59
      %p61 = scmp.ne.s32.totalorder %s53, %s55
      %p62 = scmp.eq.s32.totalorder %s24, 3
      %p63 = por %p61, %p62
      %p64 = scmp.ne.s32.totalorder %s55, %s56
      %p65 = scmp.eq.s32.totalorder %s24, 0
      %p66 = por %p64, %p65
      %p67 = scmp.ne.s32.totalorder %s55, %s56
      %p68 = scmp.eq.s32.totalorder %s25, 3
      %p69 = por %p67, %p68
      %p71 = scmp.ne.s32.totalorder %s56, %s70
      %p72 = scmp.eq.s32.totalorder %s25, 0
      %p73 = por %p71, %p72
      %s75 = sadd.s32 %s74, 1
      %p78 = scmp.eq.s32.totalorder %s19, 3
      %p79 = scmp.ne.s32.totalorder %s74, %s76
      %p80 = scmp.eq.s32.totalorder %s19, 0
      %p81 = por %p79, %p80
      %p82 = scmp.ne.s32.totalorder %s74, %s76
      %p83 = scmp.eq.s32.totalorder %s24, 3
      %p84 = por %p82, %p83
      %p85 = scmp.ne.s32.totalorder %s76, %s77
      %p86 = scmp.eq.s32.totalorder %s24, 0
      %p87 = por %p85, %p86
      %p88 = scmp.ne.s32.totalorder %s76, %s77
      %p89 = scmp.eq.s32.totalorder %s25, 3
      %p90 = por %p88, %p89
      %p92 = scmp.ne.s32.totalorder %s77, %s91
      %p93 = scmp.eq.s32.totalorder %s25, 0
      %p94 = por %p92, %p93
      %s96 = sadd.s32 %s95, 1
      %p99 = scmp.eq.s32.totalorder %s19, 3
      %p100 = scmp.ne.s32.totalorder %s95, %s97
      %p101 = scmp.eq.s32.totalorder %s19, 0
      %p102 = por %p100, %p101
      %p103 = scmp.ne.s32.totalorder %s95, %s97
      %p104 = scmp.eq.s32.totalorder %s24, 3
      %p105 = por %p103, %p104
      %p106 = scmp.ne.s32.totalorder %s97, %s98
      %p107 = scmp.eq.s32.totalorder %s24, 0
      %p108 = por %p106, %p107
      %p109 = scmp.ne.s32.totalorder %s97, %s98
      %p110 = scmp.eq.s32.totalorder %s25, 3
      %p111 = por %p109, %p110
      %p113 = scmp.ne.s32.totalorder %s98, %s112
      %p114 = scmp.eq.s32.totalorder %s25, 0
      %p115 = por %p113, %p114
      %s117 = sadd.s32 %s116, 1
      %p120 = scmp.eq.s32.totalorder %s19, 3
      %p121 = scmp.ne.s32.totalorder %s116, %s118
      %p122 = scmp.eq.s32.totalorder %s19, 0
      %p123 = por %p121, %p122
      %p124 = scmp.ne.s32.totalorder %s116, %s118
      %p125 = scmp.eq.s32.totalorder %s24, 3
      %p126 = por %p124, %p125
      %p127 = scmp.ne.s32.totalorder %s118, %s119
      %p128 = scmp.eq.s32.totalorder %s24, 0
      %p129 = por %p127, %p128
      %p130 = scmp.ne.s32.totalorder %s118, %s119
      %p131 = scmp.eq.s32.totalorder %s25, 3
      %p132 = por %p130, %p131
      %p134 = scmp.ne.s32.totalorder %s119, %s133
      %p135 = scmp.eq.s32.totalorder %s25, 0
      %p136 = por %p134, %p135
      %s137 = ssub.s32 %s19, %s26
      %p138 = scmp.eq.s32.totalorder %s137, 0
      %s140 = sadd.s32 %s139, 1
      %s141 = scalar_select %p138, %s139, %s140
      %p144 = pneg %p138
      %p145 = scmp.eq.s32.totalorder %s19, 3
      %p146 = por %p144, %p145
      %p147 = scmp.ne.s32.totalorder %s139, %s142
      %p148 = scmp.eq.s32.totalorder %s19, 0
      %p149 = por %p147, %p148
      %p150 = scmp.ne.s32.totalorder %s139, %s142
      %p151 = scmp.eq.s32.totalorder %s24, 3
      %p152 = por %p150, %p151
      %p153 = scmp.ne.s32.totalorder %s142, %s143
      %p154 = scmp.eq.s32.totalorder %s24, 0
      %p155 = por %p153, %p154
      %p156 = scmp.ne.s32.totalorder %s142, %s143
      %p157 = scmp.eq.s32.totalorder %s25, 3
      %p158 = por %p156, %p157
      %p160 = scmp.ne.s32.totalorder %s143, %s159
      %p161 = scmp.eq.s32.totalorder %s25, 0
      %p162 = por %p160, %p161
      %p163 = scmp.le.s32.totalorder 1, %s19
      %p164 = scmp.lt.s32.totalorder %s19, 5
      %p165 = pnand %p163, %p164
      %p166 = pneg %p165
      // Predicated region
      $region9: #{tpu_custom_call.1} parent=5 // pred_check
        _
      $region10: #{tpu_custom_call.1} parent=5 // pred_check_branch
        %168 = sbr.rel (%p165) target = $region12
      $region11: #{tpu_custom_call.1} parent=5 // pred_region
        %s169 = ssub.s32 %s19, 1
        // Predicated region
        $region13: #{tpu_custom_call.1} parent=11 // pred_check
          %p170 = pneg %p66
        $region14: #{tpu_custom_call.1} parent=11 // pred_check_branch
          %172 = sbr.rel (%p170) target = $region16
        $region15: #{tpu_custom_call.1} parent=11 // pred_region
          %s174 = ssub.s32 4096, 4096
          %175 = vsyncadd [#allocation6], %s174
          %s176 = sshll.u32 [#allocation5], 4
          %s177 = int_to_ptr.vmem [resolvable:$true] %s176
          %182 = dma.hbm_to_vmem [thread:$0]  %s1, 4096, %s177, [#allocation6], 64, 64, 4
        $region16: #{tpu_custom_call.1} parent=11 // pred_fallthru
          _
        // Predicated region
        $region17: #{tpu_custom_call.1} parent=11 // pred_check
          %p183 = pneg %p87
        $region18: #{tpu_custom_call.1} parent=11 // pred_check_branch
          %185 = sbr.rel (%p183) target = $region20
        $region19: #{tpu_custom_call.1} parent=11 // pred_region
          %s187 = ssub.s32 16, 16
          %188 = vsyncadd [#allocation6], %s187
          %s190 = sshll.u32 [#allocation7], 4
          %s191 = int_to_ptr.vmem [resolvable:$true] %s190
          %193 = dma.hbm_to_vmem [thread:$0]  %s2, 16, %s191, [#allocation6]
        $region20: #{tpu_custom_call.1} parent=11 // pred_fallthru
          _
        // Predicated region
        $region21: #{tpu_custom_call.1} parent=11 // pred_check
          %p194 = pneg %p108
        $region22: #{tpu_custom_call.1} parent=11 // pred_check_branch
          %196 = sbr.rel (%p194) target = $region24
        $region23: #{tpu_custom_call.1} parent=11 // pred_region
          %s198 = ssub.s32 4096, 4096
          %199 = vsyncadd [#allocation9], %s198
          %s200 = sshll.u32 [#allocation8], 4
          %s201 = int_to_ptr.vmem [resolvable:$true] %s200
          %206 = dma.hbm_to_vmem [thread:$0]  %s3, 4096, %s201, [#allocation9], 256, 256, 16
        $region24: #{tpu_custom_call.1} parent=11 // pred_fallthru
          _
        // Predicated region
        $region25: #{tpu_custom_call.1} parent=11 // pred_check
          %p207 = pneg %p129
        $region26: #{tpu_custom_call.1} parent=11 // pred_check_branch
          %209 = sbr.rel (%p207) target = $region28
        $region27: #{tpu_custom_call.1} parent=11 // pred_region
          %s211 = ssub.s32 64, 64
          %212 = vsyncadd [#allocation9], %s211
          %s214 = sshll.u32 [#allocation10], 4
          %s215 = int_to_ptr.vmem [resolvable:$true] %s214
          %217 = dma.hbm_to_vmem [thread:$0]  %s4, 64, %s215, [#allocation9]
        $region28: #{tpu_custom_call.1} parent=11 // pred_fallthru
          _
      $region12: #{tpu_custom_call.1} parent=5 // pred_fallthru
        _
      %p218 = scmp.lt.s32.totalorder %s19, 4
      // Predicated region
      $region29: #{tpu_custom_call.1} parent=5 // pred_check
        %p219 = pneg %p218
      $region30: #{tpu_custom_call.1} parent=5 // pred_check_branch
        %221 = sbr.rel (%p219) target = $region32
      $region31: #{tpu_custom_call.1} parent=5 // pred_region
        // Predicated region
        $region33: #{tpu_custom_call.1} parent=31 // pred_check
          %p222 = pneg %p39
        $region34: #{tpu_custom_call.1} parent=31 // pred_check_branch
          %224 = sbr.rel (%p222) target = $region36
        $region35: #{tpu_custom_call.1} parent=31 // pred_region
          %s225 = sand.u32 %s29, 1
          %s226 = scalar_lea.sflag [#allocation3], %s225
          %s227 = sand.u32 %s29, 1
          %s228 = smul.addr %s227, 512
          %s229 = scalar_lea.vmem [#allocation2], %s228
          %s230 = smul.u32 16, %s19
          %s232 = ssub.s32 8192, 8192
          %233 = vsyncadd %s226, %s232
          %s234 = smul.addr %s230, 4
          %s235 = smul.addr %s234, 128
          %s236 = scalar_lea.hbm %s0, %s235
          %s237 = sshll.u32 %s229, 4
          %s238 = int_to_ptr.vmem [resolvable:$true] %s237
          %243 = dma.hbm_to_vmem [thread:$0]  %s236, 8192, %s238, %s226, 512, 512, 32
        $region36: #{tpu_custom_call.1} parent=31 // pred_fallthru
          _
      $region32: #{tpu_custom_call.1} parent=5 // pred_fallthru
        _
      %p244 = scmp.le.s32.totalorder 1, %s19
      %p245 = scmp.lt.s32.totalorder %s19, 5
      %p246 = pnand %p244, %p245
      %p247 = pneg %p246
      // Predicated region
      $region37: #{tpu_custom_call.1} parent=5 // pred_check
        _
      $region38: #{tpu_custom_call.1} parent=5 // pred_check_branch
        %249 = sbr.rel (%p246) target = $region40
      $region39: #{tpu_custom_call.1} parent=5 // pred_region
        %s250 = ssub.s32 %s19, 1
        %s251 = sand.u32 %s32, 1
        %s252 = scalar_lea.sflag [#allocation3], %s251
        %s253 = sand.u32 %s32, 1
        %s254 = smul.addr %s253, 512
        %s255 = scalar_lea.vmem [#allocation2], %s254
        // Predicated region
        $region41: #{tpu_custom_call.1} parent=39 // pred_check
          %p256 = pneg %p45
        $region42: #{tpu_custom_call.1} parent=39 // pred_check_branch
          %258 = sbr.rel (%p256) target = $region44
        $region43: #{tpu_custom_call.1} parent=39 // pred_region
          %259 = dma.done %s252, 8192
        $region44: #{tpu_custom_call.1} parent=39 // pred_fallthru
          _
        // Predicated region
        $region45: #{tpu_custom_call.1} parent=39 // pred_check
          %p260 = pneg %p66
        $region46: #{tpu_custom_call.1} parent=39 // pred_check_branch
          %262 = sbr.rel (%p260) target = $region48
        $region47: #{tpu_custom_call.1} parent=39 // pred_region
          %263 = dma.done [#allocation6], 4096
        $region48: #{tpu_custom_call.1} parent=39 // pred_fallthru
          _
        // Predicated region
        $region49: #{tpu_custom_call.1} parent=39 // pred_check
          %p264 = pneg %p87
        $region50: #{tpu_custom_call.1} parent=39 // pred_check_branch
          %266 = sbr.rel (%p264) target = $region52
        $region51: #{tpu_custom_call.1} parent=39 // pred_region
          %267 = dma.done [#allocation6], 16
        $region52: #{tpu_custom_call.1} parent=39 // pred_fallthru
          _
        // Predicated region
        $region53: #{tpu_custom_call.1} parent=39 // pred_check
          %p268 = pneg %p108
        $region54: #{tpu_custom_call.1} parent=39 // pred_check_branch
          %270 = sbr.rel (%p268) target = $region56
        $region55: #{tpu_custom_call.1} parent=39 // pred_region
          %271 = dma.done [#allocation9], 4096
        $region56: #{tpu_custom_call.1} parent=39 // pred_fallthru
          _
        // Predicated region
        $region57: #{tpu_custom_call.1} parent=39 // pred_check
          %p272 = pneg %p129
        $region58: #{tpu_custom_call.1} parent=39 // pred_check_branch
          %274 = sbr.rel (%p272) target = $region60
        $region59: #{tpu_custom_call.1} parent=39 // pred_region
          %275 = dma.done [#allocation9], 64
        $region60: #{tpu_custom_call.1} parent=39 // pred_fallthru
          _
        %s276 = sand.u32 %s32, 1
        %s277 = scalar_lea.sflag [#allocation3], %s276
        %s278 = sand.u32 %s32, 1
        %s279 = smul.addr %s278, 512
        %s280 = scalar_lea.vmem [#allocation2], %s279
        %p281 = pneg %p45
        %p282 = pneg %p42
        %p283 = pneg %p66
        %p284 = pneg %p63
        %p285 = pneg %p87
        %p286 = pneg %p84
        %p287 = pneg %p108
        %p288 = pneg %p105
        %p289 = pneg %p129
        %p290 = pneg %p126
        %p291 = pneg %p155
        %p292 = pneg %p152
        %s293 = sand.u32 %s142, 1
        %s294 = scalar_lea.sflag [#allocation4], %s293
        %s295 = sand.u32 %s142, 1
        %s296 = smul.addr %s295, 512
        %s297 = scalar_lea.vmem [#allocation11], %s296
        %s298 = smul.u32 16, %s24
        %s299 = smul.u32 16, %s24
        %v301 = vld [vmem:[%s255] sm:$0xff]
        %v302 = vld [vmem:[%s255 + $0x8] sm:$0xff]
        %v303 = vld [vmem:[%s255 + $0x10] sm:$0xff]
        %v304 = vld [vmem:[%s255 + $0x18] sm:$0xff]
        %v305 = vld [vmem:[%s255 + $0x20] sm:$0xff]
        %v306 = vld [vmem:[%s255 + $0x28] sm:$0xff]
        %v307 = vld [vmem:[%s255 + $0x30] sm:$0xff]
        %v308 = vld [vmem:[%s255 + $0x38] sm:$0xff]
        %v309 = vld [vmem:[%s255 + $0x40] sm:$0xff]
        %v310 = vld [vmem:[%s255 + $0x48] sm:$0xff]
        %v311 = vld [vmem:[%s255 + $0x50] sm:$0xff]
        %v312 = vld [vmem:[%s255 + $0x58] sm:$0xff]
        %v313 = vld [vmem:[%s255 + $0x60] sm:$0xff]
        %v314 = vld [vmem:[%s255 + $0x68] sm:$0xff]
        %v315 = vld [vmem:[%s255 + $0x70] sm:$0xff]
        %v316 = vld [vmem:[%s255 + $0x78] sm:$0xff]
        %v317 = vld [vmem:[%s255 + $0x80] sm:$0xff]
        %v318 = vld [vmem:[%s255 + $0x88] sm:$0xff]
        %v319 = vld [vmem:[%s255 + $0x90] sm:$0xff]
        %v320 = vld [vmem:[%s255 + $0x98] sm:$0xff]
        %v321 = vld [vmem:[%s255 + $0xa0] sm:$0xff]
        %v322 = vld [vmem:[%s255 + $0xa8] sm:$0xff]
        %v323 = vld [vmem:[%s255 + $0xb0] sm:$0xff]
        %v324 = vld [vmem:[%s255 + $0xb8] sm:$0xff]
        %v325 = vld [vmem:[%s255 + $0xc0] sm:$0xff]
        %v326 = vld [vmem:[%s255 + $0xc8] sm:$0xff]
        %v327 = vld [vmem:[%s255 + $0xd0] sm:$0xff]
        %v328 = vld [vmem:[%s255 + $0xd8] sm:$0xff]
        %v329 = vld [vmem:[%s255 + $0xe0] sm:$0xff]
        %v330 = vld [vmem:[%s255 + $0xe8] sm:$0xff]
        %v331 = vld [vmem:[%s255 + $0xf0] sm:$0xff]
        %v332 = vld [vmem:[%s255 + $0xf8] sm:$0xff]
        %v333 = vld [vmem:[%s255 + $0x100] sm:$0xff]
        %v334 = vld [vmem:[%s255 + $0x108] sm:$0xff]
        %v335 = vld [vmem:[%s255 + $0x110] sm:$0xff]
        %v336 = vld [vmem:[%s255 + $0x118] sm:$0xff]
        %v337 = vld [vmem:[%s255 + $0x120] sm:$0xff]
        %v338 = vld [vmem:[%s255 + $0x128] sm:$0xff]
        %v339 = vld [vmem:[%s255 + $0x130] sm:$0xff]
        %v340 = vld [vmem:[%s255 + $0x138] sm:$0xff]
        %v341 = vld [vmem:[%s255 + $0x140] sm:$0xff]
        %v342 = vld [vmem:[%s255 + $0x148] sm:$0xff]
        %v343 = vld [vmem:[%s255 + $0x150] sm:$0xff]
        %v344 = vld [vmem:[%s255 + $0x158] sm:$0xff]
        %v345 = vld [vmem:[%s255 + $0x160] sm:$0xff]
        %v346 = vld [vmem:[%s255 + $0x168] sm:$0xff]
        %v347 = vld [vmem:[%s255 + $0x170] sm:$0xff]
        %v348 = vld [vmem:[%s255 + $0x178] sm:$0xff]
        %v349 = vld [vmem:[%s255 + $0x180] sm:$0xff]
        %v350 = vld [vmem:[%s255 + $0x188] sm:$0xff]
        %v351 = vld [vmem:[%s255 + $0x190] sm:$0xff]
        %v352 = vld [vmem:[%s255 + $0x198] sm:$0xff]
        %v353 = vld [vmem:[%s255 + $0x1a0] sm:$0xff]
        %v354 = vld [vmem:[%s255 + $0x1a8] sm:$0xff]
        %v355 = vld [vmem:[%s255 + $0x1b0] sm:$0xff]
        %v356 = vld [vmem:[%s255 + $0x1b8] sm:$0xff]
        %v357 = vld [vmem:[%s255 + $0x1c0] sm:$0xff]
        %v358 = vld [vmem:[%s255 + $0x1c8] sm:$0xff]
        %v359 = vld [vmem:[%s255 + $0x1d0] sm:$0xff]
        %v360 = vld [vmem:[%s255 + $0x1d8] sm:$0xff]
        %v361 = vld [vmem:[%s255 + $0x1e0] sm:$0xff]
        %v362 = vld [vmem:[%s255 + $0x1e8] sm:$0xff]
        %v363 = vld [vmem:[%s255 + $0x1f0] sm:$0xff]
        %v364 = vld [vmem:[%s255 + $0x1f8] sm:$0xff]
        %v365 = vpack.c.bf16 %v305, %v301
        %v366 = vpack.c.bf16 %v306, %v302
        %v367 = vpack.c.bf16 %v307, %v303
        %v368 = vpack.c.bf16 %v308, %v304
        %v369 = vpack.c.bf16 %v313, %v309
        %v370 = vpack.c.bf16 %v314, %v310
        %v371 = vpack.c.bf16 %v315, %v311
        %v372 = vpack.c.bf16 %v316, %v312
        %v373 = vpack.c.bf16 %v321, %v317
        %v374 = vpack.c.bf16 %v322, %v318
        %v375 = vpack.c.bf16 %v323, %v319
        %v376 = vpack.c.bf16 %v324, %v320
        %v377 = vpack.c.bf16 %v329, %v325
        %v378 = vpack.c.bf16 %v330, %v326
        %v379 = vpack.c.bf16 %v331, %v327
        %v380 = vpack.c.bf16 %v332, %v328
        %v381 = vpack.c.bf16 %v337, %v333
        %v382 = vpack.c.bf16 %v338, %v334
        %v383 = vpack.c.bf16 %v339, %v335
        %v384 = vpack.c.bf16 %v340, %v336
        %v385 = vpack.c.bf16 %v345, %v341
        %v386 = vpack.c.bf16 %v346, %v342
        %v387 = vpack.c.bf16 %v347, %v343
        %v388 = vpack.c.bf16 %v348, %v344
        %v389 = vpack.c.bf16 %v353, %v349
        %v390 = vpack.c.bf16 %v354, %v350
        %v391 = vpack.c.bf16 %v355, %v351
        %v392 = vpack.c.bf16 %v356, %v352
        %v393 = vpack.c.bf16 %v361, %v357
        %v394 = vpack.c.bf16 %v362, %v358
        %v395 = vpack.c.bf16 %v363, %v359
        %v396 = vpack.c.bf16 %v364, %v360
        %v397 = vld [vmem:[#allocation5] sm:$0xf]
        %v398 = vld [vmem:[#allocation5 + $0x4] sm:$0xf]
        %v399 = vld [vmem:[#allocation5 + $0x8] sm:$0xf]
        %v400 = vld [vmem:[#allocation5 + $0xc] sm:$0xf]
        %v401 = vld [vmem:[#allocation5 + $0x10] sm:$0xf]
        %v402 = vld [vmem:[#allocation5 + $0x14] sm:$0xf]
        %v403 = vld [vmem:[#allocation5 + $0x18] sm:$0xf]
        %v404 = vld [vmem:[#allocation5 + $0x1c] sm:$0xf]
        %v405 = vld [vmem:[#allocation5 + $0x20] sm:$0xf]
        %v406 = vld [vmem:[#allocation5 + $0x24] sm:$0xf]
        %v407 = vld [vmem:[#allocation5 + $0x28] sm:$0xf]
        %v408 = vld [vmem:[#allocation5 + $0x2c] sm:$0xf]
        %v409 = vld [vmem:[#allocation5 + $0x30] sm:$0xf]
        %v410 = vld [vmem:[#allocation5 + $0x34] sm:$0xf]
        %v411 = vld [vmem:[#allocation5 + $0x38] sm:$0xf]
        %v412 = vld [vmem:[#allocation5 + $0x3c] sm:$0xf]
        %v413 = vld [vmem:[#allocation5 + $0x40] sm:$0xf]
        %v414 = vld [vmem:[#allocation5 + $0x44] sm:$0xf]
        %v415 = vld [vmem:[#allocation5 + $0x48] sm:$0xf]
        %v416 = vld [vmem:[#allocation5 + $0x4c] sm:$0xf]
        %v417 = vld [vmem:[#allocation5 + $0x50] sm:$0xf]
        %v418 = vld [vmem:[#allocation5 + $0x54] sm:$0xf]
        %v419 = vld [vmem:[#allocation5 + $0x58] sm:$0xf]
        %v420 = vld [vmem:[#allocation5 + $0x5c] sm:$0xf]
        %v421 = vld [vmem:[#allocation5 + $0x60] sm:$0xf]
        %v422 = vld [vmem:[#allocation5 + $0x64] sm:$0xf]
        %v423 = vld [vmem:[#allocation5 + $0x68] sm:$0xf]
        %v424 = vld [vmem:[#allocation5 + $0x6c] sm:$0xf]
        %v425 = vld [vmem:[#allocation5 + $0x70] sm:$0xf]
        %v426 = vld [vmem:[#allocation5 + $0x74] sm:$0xf]
        %v427 = vld [vmem:[#allocation5 + $0x78] sm:$0xf]
        %v428 = vld [vmem:[#allocation5 + $0x7c] sm:$0xf]
        %v429 = vld [vmem:[#allocation5 + $0x80] sm:$0xf]
        %v430 = vld [vmem:[#allocation5 + $0x84] sm:$0xf]
        %v431 = vld [vmem:[#allocation5 + $0x88] sm:$0xf]
        %v432 = vld [vmem:[#allocation5 + $0x8c] sm:$0xf]
        %v433 = vld [vmem:[#allocation5 + $0x90] sm:$0xf]
        %v434 = vld [vmem:[#allocation5 + $0x94] sm:$0xf]
        %v435 = vld [vmem:[#allocation5 + $0x98] sm:$0xf]
        %v436 = vld [vmem:[#allocation5 + $0x9c] sm:$0xf]
        %v437 = vld [vmem:[#allocation5 + $0xa0] sm:$0xf]
        %v438 = vld [vmem:[#allocation5 + $0xa4] sm:$0xf]
        %v439 = vld [vmem:[#allocation5 + $0xa8] sm:$0xf]
        %v440 = vld [vmem:[#allocation5 + $0xac] sm:$0xf]
        %v441 = vld [vmem:[#allocation5 + $0xb0] sm:$0xf]
        %v442 = vld [vmem:[#allocation5 + $0xb4] sm:$0xf]
        %v443 = vld [vmem:[#allocation5 + $0xb8] sm:$0xf]
        %v444 = vld [vmem:[#allocation5 + $0xbc] sm:$0xf]
        %v445 = vld [vmem:[#allocation5 + $0xc0] sm:$0xf]
        %v446 = vld [vmem:[#allocation5 + $0xc4] sm:$0xf]
        %v447 = vld [vmem:[#allocation5 + $0xc8] sm:$0xf]
        %v448 = vld [vmem:[#allocation5 + $0xcc] sm:$0xf]
        %v449 = vld [vmem:[#allocation5 + $0xd0] sm:$0xf]
        %v450 = vld [vmem:[#allocation5 + $0xd4] sm:$0xf]
        %v451 = vld [vmem:[#allocation5 + $0xd8] sm:$0xf]
        %v452 = vld [vmem:[#allocation5 + $0xdc] sm:$0xf]
        %v453 = vld [vmem:[#allocation5 + $0xe0] sm:$0xf]
        %v454 = vld [vmem:[#allocation5 + $0xe4] sm:$0xf]
        %v455 = vld [vmem:[#allocation5 + $0xe8] sm:$0xf]
        %v456 = vld [vmem:[#allocation5 + $0xec] sm:$0xf]
        %v457 = vld [vmem:[#allocation5 + $0xf0] sm:$0xf]
        %v458 = vld [vmem:[#allocation5 + $0xf4] sm:$0xf]
        %v459 = vld [vmem:[#allocation5 + $0xf8] sm:$0xf]
        %v460 = vld [vmem:[#allocation5 + $0xfc] sm:$0xf]
        %v461 = vld [vmem:[#allocation7] sm:$0x1]
        %v463 = vlaneseq
        %v464 = vshrl.u32 %v463, 7
        %v465 = vsub.s32 0, %v464
        %v466 = vrot.slane %v461, %v465
        %v532 = vunpack.c.l.b16 %v397
        %v533 = vunpack.c.l.b16 %v398
        %v534 = vunpack.c.l.b16 %v399
        %v535 = vunpack.c.l.b16 %v400
        %v536 = vunpack.c.l.b16 %v401
        %v537 = vunpack.c.l.b16 %v402
        %v538 = vunpack.c.l.b16 %v403
        %v539 = vunpack.c.l.b16 %v404
        %v540 = vunpack.c.l.b16 %v405
        %v541 = vunpack.c.l.b16 %v406
        %v542 = vunpack.c.l.b16 %v407
        %v543 = vunpack.c.l.b16 %v408
        %v544 = vunpack.c.l.b16 %v409
        %v545 = vunpack.c.l.b16 %v410
        %v546 = vunpack.c.l.b16 %v411
        %v547 = vunpack.c.l.b16 %v412
        %v548 = vunpack.c.l.b16 %v413
        %v549 = vunpack.c.l.b16 %v414
        %v550 = vunpack.c.l.b16 %v415
        %v551 = vunpack.c.l.b16 %v416
        %v552 = vunpack.c.l.b16 %v417
        %v553 = vunpack.c.l.b16 %v418
        %v554 = vunpack.c.l.b16 %v419
        %v555 = vunpack.c.l.b16 %v420
        %v556 = vunpack.c.l.b16 %v421
        %v557 = vunpack.c.l.b16 %v422
        %v558 = vunpack.c.l.b16 %v423
        %v559 = vunpack.c.l.b16 %v424
        %v560 = vunpack.c.l.b16 %v425
        %v561 = vunpack.c.l.b16 %v426
        %v562 = vunpack.c.l.b16 %v427
        %v563 = vunpack.c.l.b16 %v428
        %v564 = vunpack.c.l.b16 %v429
        %v565 = vunpack.c.l.b16 %v430
        %v566 = vunpack.c.l.b16 %v431
        %v567 = vunpack.c.l.b16 %v432
        %v568 = vunpack.c.l.b16 %v433
        %v569 = vunpack.c.l.b16 %v434
        %v570 = vunpack.c.l.b16 %v435
        %v571 = vunpack.c.l.b16 %v436
        %v572 = vunpack.c.l.b16 %v437
        %v573 = vunpack.c.l.b16 %v438
        %v574 = vunpack.c.l.b16 %v439
        %v575 = vunpack.c.l.b16 %v440
        %v576 = vunpack.c.l.b16 %v441
        %v577 = vunpack.c.l.b16 %v442
        %v578 = vunpack.c.l.b16 %v443
        %v579 = vunpack.c.l.b16 %v444
        %v580 = vunpack.c.l.b16 %v445
        %v581 = vunpack.c.l.b16 %v446
        %v582 = vunpack.c.l.b16 %v447
        %v583 = vunpack.c.l.b16 %v448
        %v584 = vunpack.c.l.b16 %v449
        %v585 = vunpack.c.l.b16 %v450
        %v586 = vunpack.c.l.b16 %v451
        %v587 = vunpack.c.l.b16 %v452
        %v588 = vunpack.c.l.b16 %v453
        %v589 = vunpack.c.l.b16 %v454
        %v590 = vunpack.c.l.b16 %v455
        %v591 = vunpack.c.l.b16 %v456
        %v592 = vunpack.c.l.b16 %v457
        %v593 = vunpack.c.l.b16 %v458
        %v594 = vunpack.c.l.b16 %v459
        %v595 = vunpack.c.l.b16 %v460
        %v596 = vpack.c.b16 %v533, %v532
        %v597 = vpack.c.b16 %v535, %v534
        %v598 = vpack.c.b16 %v537, %v536
        %v599 = vpack.c.b16 %v539, %v538
        %v600 = vpack.c.b16 %v541, %v540
        %v601 = vpack.c.b16 %v543, %v542
        %v602 = vpack.c.b16 %v545, %v544
        %v603 = vpack.c.b16 %v547, %v546
        %v604 = vpack.c.b16 %v549, %v548
        %v605 = vpack.c.b16 %v551, %v550
        %v606 = vpack.c.b16 %v553, %v552
        %v607 = vpack.c.b16 %v555, %v554
        %v608 = vpack.c.b16 %v557, %v556
        %v609 = vpack.c.b16 %v559, %v558
        %v610 = vpack.c.b16 %v561, %v560
        %v611 = vpack.c.b16 %v563, %v562
        %v612 = vpack.c.b16 %v565, %v564
        %v613 = vpack.c.b16 %v567, %v566
        %v614 = vpack.c.b16 %v569, %v568
        %v615 = vpack.c.b16 %v571, %v570
        %v616 = vpack.c.b16 %v573, %v572
        %v617 = vpack.c.b16 %v575, %v574
        %v618 = vpack.c.b16 %v577, %v576
        %v619 = vpack.c.b16 %v579, %v578
        %v620 = vpack.c.b16 %v581, %v580
        %v621 = vpack.c.b16 %v583, %v582
        %v622 = vpack.c.b16 %v585, %v584
        %v623 = vpack.c.b16 %v587, %v586
        %v624 = vpack.c.b16 %v589, %v588
        %v625 = vpack.c.b16 %v591, %v590
        %v626 = vpack.c.b16 %v593, %v592
        %v627 = vpack.c.b16 %v595, %v594
        %660 = vmatprep.subr.bf16.mxu0 0
        %661 = vmatpush1.bf16.msra.mxu0 %v596
        %662 = vmatprep.subr.bf16.mxu0 0
        %663 = vmatpush1.bf16.msra.mxu0 %v597
        %664 = vmatprep.subr.bf16.mxu0 0
        %665 = vmatpush1.bf16.msra.mxu0 %v598
        %666 = vmatprep.subr.bf16.mxu0 0
        %667 = vmatpush1.bf16.msra.mxu0 %v599
        %668 = vmatprep.subr.bf16.mxu0 0
        %669 = vmatpush1.bf16.msra.mxu0 %v600
        %670 = vmatprep.subr.bf16.mxu0 0
        %671 = vmatpush1.bf16.msra.mxu0 %v601
        %672 = vmatprep.subr.bf16.mxu0 0
        %673 = vmatpush1.bf16.msra.mxu0 %v602
        %674 = vmatprep.subr.bf16.mxu0 0
        %675 = vmatpush1.bf16.msra.mxu0 %v603
        %676 = vmatprep.subr.bf16.mxu0 0
        %677 = vmatpush1.bf16.msra.mxu0 %v604
        %678 = vmatprep.subr.bf16.mxu0 0
        %679 = vmatpush1.bf16.msra.mxu0 %v605
        %680 = vmatprep.subr.bf16.mxu0 0
        %681 = vmatpush1.bf16.msra.mxu0 %v606
        %682 = vmatprep.subr.bf16.mxu0 0
        %683 = vmatpush1.bf16.msra.mxu0 %v607
        %684 = vmatprep.subr.bf16.mxu0 0
        %685 = vmatpush1.bf16.msra.mxu0 %v608
        %686 = vmatprep.subr.bf16.mxu0 0
        %687 = vmatpush1.bf16.msra.mxu0 %v609
        %688 = vmatprep.subr.bf16.mxu0 0
        %689 = vmatpush1.bf16.msra.mxu0 %v610
        %690 = vmatprep.subr.bf16.mxu0 0
        %691 = vmatpush1.bf16.msra.mxu0 %v611
        %692 = vmatprep.mubr.bf16.mxu0 %v366
        %693 = vmatmul.mubr.bf16.gmra.mrb[0].mxu0 %v365
        %v694 = vpop.f32.mrb[0].mxu0
        %v695 = vadd.f32 %v466, %v694
        %v696 = vpop.f32.mrb[0].mxu0
        %v697 = vpop.f32.mrb[0].mxu0
        %v698 = vadd.f32 %v466, %v697
        %v699 = vpop.f32.mrb[0].mxu0
        %700 = vmatprep.mubr.bf16.mxu0 %v370
        %701 = vmatmul.mubr.bf16.gmra.mrb[0].mxu0 %v369
        %v702 = vpop.f32.mrb[0].mxu0
        %v703 = vadd.f32 %v466, %v702
        %v704 = vpop.f32.mrb[0].mxu0
        %v705 = vpop.f32.mrb[0].mxu0
        %v706 = vadd.f32 %v466, %v705
        %v707 = vpop.f32.mrb[0].mxu0
        %708 = vmatprep.mubr.bf16.mxu0 %v374
        %709 = vmatmul.mubr.bf16.gmra.mrb[0].mxu0 %v373
        %v710 = vpop.f32.mrb[0].mxu0
        %v711 = vadd.f32 %v466, %v710
        %v712 = vpop.f32.mrb[0].mxu0
        %v713 = vpop.f32.mrb[0].mxu0
        %v714 = vadd.f32 %v466, %v713
        %v715 = vpop.f32.mrb[0].mxu0
        %716 = vmatprep.mubr.bf16.mxu0 %v378
        %717 = vmatmul.mubr.bf16.gmra.mrb[0].mxu0 %v377
        %v718 = vpop.f32.mrb[0].mxu0
        %v719 = vadd.f32 %v466, %v718
        %v720 = vpop.f32.mrb[0].mxu0
        %v721 = vpop.f32.mrb[0].mxu0
        %v722 = vadd.f32 %v466, %v721
        %v723 = vpop.f32.mrb[0].mxu0
        %724 = vmatprep.mubr.bf16.mxu0 %v382
        %725 = vmatmul.mubr.bf16.gmra.mrb[0].mxu0 %v381
        %v726 = vpop.f32.mrb[0].mxu0
        %v727 = vadd.f32 %v466, %v726
        %v728 = vpop.f32.mrb[0].mxu0
        %v729 = vpop.f32.mrb[0].mxu0
        %v730 = vadd.f32 %v466, %v729
        %v731 = vpop.f32.mrb[0].mxu0
        %732 = vmatprep.mubr.bf16.mxu0 %v386
        %733 = vmatmul.mubr.bf16.gmra.mrb[0].mxu0 %v385
        %v734 = vpop.f32.mrb[0].mxu0
        %v735 = vadd.f32 %v466, %v734
        %v736 = vpop.f32.mrb[0].mxu0
        %v737 = vpop.f32.mrb[0].mxu0
        %v738 = vadd.f32 %v466, %v737
        %v739 = vpop.f32.mrb[0].mxu0
        %740 = vmatprep.mubr.bf16.mxu0 %v390
        %741 = vmatmul.mubr.bf16.gmra.mrb[0].mxu0 %v389
        %v742 = vpop.f32.mrb[0].mxu0
        %v743 = vadd.f32 %v466, %v742
        %v744 = vpop.f32.mrb[0].mxu0
        %v745 = vpop.f32.mrb[0].mxu0
        %v746 = vadd.f32 %v466, %v745
        %v747 = vpop.f32.mrb[0].mxu0
        %748 = vmatprep.mubr.bf16.mxu0 %v394
        %749 = vmatmul.mubr.bf16.gmra.mrb[0].mxu0 %v393
        %v750 = vpop.f32.mrb[0].mxu0
        %v751 = vadd.f32 %v466, %v750
        %v752 = vpop.f32.mrb[0].mxu0
        %v753 = vpop.f32.mrb[0].mxu0
        %v754 = vadd.f32 %v466, %v753
        %v755 = vpop.f32.mrb[0].mxu0
        %756 = vdwg.mxu0
        %757 = vmatprep.subr.bf16.mxu0 0
        %758 = vmatpush1.bf16.msra.mxu0 %v612
        %759 = vmatprep.subr.bf16.mxu0 0
        %760 = vmatpush1.bf16.msra.mxu0 %v613
        %761 = vmatprep.subr.bf16.mxu0 0
        %762 = vmatpush1.bf16.msra.mxu0 %v614
        %763 = vmatprep.subr.bf16.mxu0 0
        %764 = vmatpush1.bf16.msra.mxu0 %v615
        %765 = vmatprep.subr.bf16.mxu0 0
        %766 = vmatpush1.bf16.msra.mxu0 %v616
        %767 = vmatprep.subr.bf16.mxu0 0
        %768 = vmatpush1.bf16.msra.mxu0 %v617
        %769 = vmatprep.subr.bf16.mxu0 0
        %770 = vmatpush1.bf16.msra.mxu0 %v618
        %771 = vmatprep.subr.bf16.mxu0 0
        %772 = vmatpush1.bf16.msra.mxu0 %v619
        %773 = vmatprep.subr.bf16.mxu0 0
        %774 = vmatpush1.bf16.msra.mxu0 %v620
        %775 = vmatprep.subr.bf16.mxu0 0
        %776 = vmatpush1.bf16.msra.mxu0 %v621
        %777 = vmatprep.subr.bf16.mxu0 0
        %778 = vmatpush1.bf16.msra.mxu0 %v622
        %779 = vmatprep.subr.bf16.mxu0 0
        %780 = vmatpush1.bf16.msra.mxu0 %v623
        %781 = vmatprep.subr.bf16.mxu0 0
        %782 = vmatpush1.bf16.msra.mxu0 %v624
        %783 = vmatprep.subr.bf16.mxu0 0
        %784 = vmatpush1.bf16.msra.mxu0 %v625
        %785 = vmatprep.subr.bf16.mxu0 0
        %786 = vmatpush1.bf16.msra.mxu0 %v626
        %787 = vmatprep.subr.bf16.mxu0 0
        %788 = vmatpush1.bf16.msra.mxu0 %v627
        %789 = vmatprep.mubr.bf16.mxu0 %v368
        %790 = vmatmul.mubr.bf16.gmra.mrb[0].mxu0 %v367
        %v791 = vpop.f32.mrb[0].mxu0
        %v792 = vadd.f32 %v695, %v791
        %v793 = vpop.f32.mrb[0].mxu0
        %v794 = vpop.f32.mrb[0].mxu0
        %v795 = vadd.f32 %v698, %v794
        %v796 = vpop.f32.mrb[0].mxu0
        %797 = vmatprep.mubr.bf16.mxu0 %v372
        %798 = vmatmul.mubr.bf16.gmra.mrb[0].mxu0 %v371
        %v799 = vpop.f32.mrb[0].mxu0
        %v800 = vadd.f32 %v703, %v799
        %v801 = vpop.f32.mrb[0].mxu0
        %v802 = vpop.f32.mrb[0].mxu0
        %v803 = vadd.f32 %v706, %v802
        %v804 = vpop.f32.mrb[0].mxu0
        %805 = vmatprep.mubr.bf16.mxu0 %v376
        %806 = vmatmul.mubr.bf16.gmra.mrb[0].mxu0 %v375
        %v807 = vpop.f32.mrb[0].mxu0
        %v808 = vadd.f32 %v711, %v807
        %v809 = vpop.f32.mrb[0].mxu0
        %v810 = vpop.f32.mrb[0].mxu0
        %v811 = vadd.f32 %v714, %v810
        %v812 = vpop.f32.mrb[0].mxu0
        %813 = vmatprep.mubr.bf16.mxu0 %v380
        %814 = vmatmul.mubr.bf16.gmra.mrb[0].mxu0 %v379
        %v815 = vpop.f32.mrb[0].mxu0
        %v816 = vadd.f32 %v719, %v815
        %v817 = vpop.f32.mrb[0].mxu0
        %v818 = vpop.f32.mrb[0].mxu0
        %v819 = vadd.f32 %v722, %v818
        %v820 = vpop.f32.mrb[0].mxu0
        %821 = vmatprep.mubr.bf16.mxu0 %v384
        %822 = vmatmul.mubr.bf16.gmra.mrb[0].mxu0 %v383
        %v823 = vpop.f32.mrb[0].mxu0
        %v824 = vadd.f32 %v727, %v823
        %v825 = vpop.f32.mrb[0].mxu0
        %v826 = vpop.f32.mrb[0].mxu0
        %v827 = vadd.f32 %v730, %v826
        %v828 = vpop.f32.mrb[0].mxu0
        %829 = vmatprep.mubr.bf16.mxu0 %v388
        %830 = vmatmul.mubr.bf16.gmra.mrb[0].mxu0 %v387
        %v831 = vpop.f32.mrb[0].mxu0
        %v832 = vadd.f32 %v735, %v831
        %v833 = vpop.f32.mrb[0].mxu0
        %v834 = vpop.f32.mrb[0].mxu0
        %v835 = vadd.f32 %v738, %v834
        %v836 = vpop.f32.mrb[0].mxu0
        %837 = vmatprep.mubr.bf16.mxu0 %v392
        %838 = vmatmul.mubr.bf16.gmra.mrb[0].mxu0 %v391
        %v839 = vpop.f32.mrb[0].mxu0
        %v840 = vadd.f32 %v743, %v839
        %v841 = vpop.f32.mrb[0].mxu0
        %v842 = vpop.f32.mrb[0].mxu0
        %v843 = vadd.f32 %v746, %v842
        %v844 = vpop.f32.mrb[0].mxu0
        %845 = vmatprep.mubr.bf16.mxu0 %v396
        %846 = vmatmul.mubr.bf16.gmra.mrb[0].mxu0 %v395
        %v847 = vpop.f32.mrb[0].mxu0
        %v848 = vadd.f32 %v751, %v847
        %v849 = vpop.f32.mrb[0].mxu0
        %v850 = vpop.f32.mrb[0].mxu0
        %v851 = vadd.f32 %v754, %v850
        %v852 = vpop.f32.mrb[0].mxu0
        %853 = vdwg.mxu0
        %v854 = vsub.f32 0.0, %v792
        %v855 = vsub.f32 0.0, %v795
        %v856 = vsub.f32 0.0, %v800
        %v857 = vsub.f32 0.0, %v803
        %v858 = vsub.f32 0.0, %v808
        %v859 = vsub.f32 0.0, %v811
        %v860 = vsub.f32 0.0, %v816
        %v861 = vsub.f32 0.0, %v819
        %v862 = vsub.f32 0.0, %v824
        %v863 = vsub.f32 0.0, %v827
        %v864 = vsub.f32 0.0, %v832
        %v865 = vsub.f32 0.0, %v835
        %v866 = vsub.f32 0.0, %v840
        %v867 = vsub.f32 0.0, %v843
        %v868 = vsub.f32 0.0, %v848
        %v869 = vsub.f32 0.0, %v851
        %v870 = vmul.f32 %v854, 1.442695
        %v871 = vpow.pop %v870
        %v872 = vmul.f32 %v855, 1.442695
        %v873 = vpow.pop %v872
        %v874 = vmul.f32 %v856, 1.442695
        %v875 = vpow.pop %v874
        %v876 = vmul.f32 %v857, 1.442695
        %v877 = vpow.pop %v876
        %v878 = vmul.f32 %v858, 1.442695
        %v879 = vpow.pop %v878
        %v880 = vmul.f32 %v859, 1.442695
        %v881 = vpow.pop %v880
        %v882 = vmul.f32 %v860, 1.442695
        %v883 = vpow.pop %v882
        %v884 = vmul.f32 %v861, 1.442695
        %v885 = vpow.pop %v884
        %v886 = vmul.f32 %v862, 1.442695
        %v887 = vpow.pop %v886
        %v888 = vmul.f32 %v863, 1.442695
        %v889 = vpow.pop %v888
        %v890 = vmul.f32 %v864, 1.442695
        %v891 = vpow.pop %v890
        %v892 = vmul.f32 %v865, 1.442695
        %v893 = vpow.pop %v892
        %v894 = vmul.f32 %v866, 1.442695
        %v895 = vpow.pop %v894
        %v896 = vmul.f32 %v867, 1.442695
        %v897 = vpow.pop %v896
        %v898 = vmul.f32 %v868, 1.442695
        %v899 = vpow.pop %v898
        %v900 = vmul.f32 %v869, 1.442695
        %v901 = vpow.pop %v900
        %v902 = vadd.f32 %v871, 1.0
        %v903 = vadd.f32 %v873, 1.0
        %v904 = vadd.f32 %v875, 1.0
        %v905 = vadd.f32 %v877, 1.0
        %v906 = vadd.f32 %v879, 1.0
        %v907 = vadd.f32 %v881, 1.0
        %v908 = vadd.f32 %v883, 1.0
        %v909 = vadd.f32 %v885, 1.0
        %v910 = vadd.f32 %v887, 1.0
        %v911 = vadd.f32 %v889, 1.0
        %v912 = vadd.f32 %v891, 1.0
        %v913 = vadd.f32 %v893, 1.0
        %v914 = vadd.f32 %v895, 1.0
        %v915 = vadd.f32 %v897, 1.0
        %v916 = vadd.f32 %v899, 1.0
        %v917 = vadd.f32 %v901, 1.0
        %v918 = vrcp.pop %v902
        %v919 = vrcp.pop %v903
        %v920 = vrcp.pop %v904
        %v921 = vrcp.pop %v905
        %v922 = vrcp.pop %v906
        %v923 = vrcp.pop %v907
        %v924 = vrcp.pop %v908
        %v925 = vrcp.pop %v909
        %v926 = vrcp.pop %v910
        %v927 = vrcp.pop %v911
        %v928 = vrcp.pop %v912
        %v929 = vrcp.pop %v913
        %v930 = vrcp.pop %v914
        %v931 = vrcp.pop %v915
        %v932 = vrcp.pop %v916
        %v933 = vrcp.pop %v917
        %v934 = vmul.f32 %v792, %v918
        %v935 = vmul.f32 %v795, %v919
        %v936 = vmul.f32 %v800, %v920
        %v937 = vmul.f32 %v803, %v921
        %v938 = vmul.f32 %v808, %v922
        %v939 = vmul.f32 %v811, %v923
        %v940 = vmul.f32 %v816, %v924
        %v941 = vmul.f32 %v819, %v925
        %v942 = vmul.f32 %v824, %v926
        %v943 = vmul.f32 %v827, %v927
        %v944 = vmul.f32 %v832, %v928
        %v945 = vmul.f32 %v835, %v929
        %v946 = vmul.f32 %v840, %v930
        %v947 = vmul.f32 %v843, %v931
        %v948 = vmul.f32 %v848, %v932
        %v949 = vmul.f32 %v851, %v933
        %v950 = vpack.c.bf16 %v935, %v934
        %v951 = vpack.c.bf16 %v937, %v936
        %v952 = vpack.c.bf16 %v939, %v938
        %v953 = vpack.c.bf16 %v941, %v940
        %v954 = vpack.c.bf16 %v943, %v942
        %v955 = vpack.c.bf16 %v945, %v944
        %v956 = vpack.c.bf16 %v947, %v946
        %v957 = vpack.c.bf16 %v949, %v948
        %v958 = vld [vmem:[#allocation8] sm:$0xff]
        %v959 = vld [vmem:[#allocation8 + $0x8] sm:$0xff]
        %v960 = vld [vmem:[#allocation8 + $0x10] sm:$0xff]
        %v961 = vld [vmem:[#allocation8 + $0x18] sm:$0xff]
        %v962 = vld [vmem:[#allocation8 + $0x20] sm:$0xff]
        %v963 = vld [vmem:[#allocation8 + $0x28] sm:$0xff]
        %v964 = vld [vmem:[#allocation8 + $0x30] sm:$0xff]
        %v965 = vld [vmem:[#allocation8 + $0x38] sm:$0xff]
        %v966 = vld [vmem:[#allocation8 + $0x40] sm:$0xff]
        %v967 = vld [vmem:[#allocation8 + $0x48] sm:$0xff]
        %v968 = vld [vmem:[#allocation8 + $0x50] sm:$0xff]
        %v969 = vld [vmem:[#allocation8 + $0x58] sm:$0xff]
        %v970 = vld [vmem:[#allocation8 + $0x60] sm:$0xff]
        %v971 = vld [vmem:[#allocation8 + $0x68] sm:$0xff]
        %v972 = vld [vmem:[#allocation8 + $0x70] sm:$0xff]
        %v973 = vld [vmem:[#allocation8 + $0x78] sm:$0xff]
        %v974 = vld [vmem:[#allocation8 + $0x80] sm:$0xff]
        %v975 = vld [vmem:[#allocation8 + $0x88] sm:$0xff]
        %v976 = vld [vmem:[#allocation8 + $0x90] sm:$0xff]
        %v977 = vld [vmem:[#allocation8 + $0x98] sm:$0xff]
        %v978 = vld [vmem:[#allocation8 + $0xa0] sm:$0xff]
        %v979 = vld [vmem:[#allocation8 + $0xa8] sm:$0xff]
        %v980 = vld [vmem:[#allocation8 + $0xb0] sm:$0xff]
        %v981 = vld [vmem:[#allocation8 + $0xb8] sm:$0xff]
        %v982 = vld [vmem:[#allocation8 + $0xc0] sm:$0xff]
        %v983 = vld [vmem:[#allocation8 + $0xc8] sm:$0xff]
        %v984 = vld [vmem:[#allocation8 + $0xd0] sm:$0xff]
        %v985 = vld [vmem:[#allocation8 + $0xd8] sm:$0xff]
        %v986 = vld [vmem:[#allocation8 + $0xe0] sm:$0xff]
        %v987 = vld [vmem:[#allocation8 + $0xe8] sm:$0xff]
        %v988 = vld [vmem:[#allocation8 + $0xf0] sm:$0xff]
        %v989 = vld [vmem:[#allocation8 + $0xf8] sm:$0xff]
        %v990 = vld [vmem:[#allocation10] sm:$0xf]
        %v992 = vlaneseq
        %v993 = vshrl.u32 %v992, 7
        %v994 = vsub.s32 0, %v993
        %v995 = vrot.slane %v990, %v994
        %v996 = vlaneseq
        %v997 = vshrl.u32 %v996, 7
        %v998 = vsub.s32 1, %v997
        %v999 = vrot.slane %v990, %v998
        %v1000 = vlaneseq
        %v1001 = vshrl.u32 %v1000, 7
        %v1002 = vsub.s32 2, %v1001
        %v1003 = vrot.slane %v990, %v1002
        %v1004 = vlaneseq
        %v1005 = vshrl.u32 %v1004, 7
        %v1006 = vsub.s32 3, %v1005
        %v1007 = vrot.slane %v990, %v1006
        %v1044 = vunpack.c.l.b16 %v958
        %v1045 = vunpack.c.h.b16 %v958
        %v1046 = vunpack.c.l.b16 %v959
        %v1047 = vunpack.c.h.b16 %v959
        %v1048 = vunpack.c.l.b16 %v960
        %v1049 = vunpack.c.h.b16 %v960
        %v1050 = vunpack.c.l.b16 %v961
        %v1051 = vunpack.c.h.b16 %v961
        %v1052 = vunpack.c.l.b16 %v962
        %v1053 = vunpack.c.h.b16 %v962
        %v1054 = vunpack.c.l.b16 %v963
        %v1055 = vunpack.c.h.b16 %v963
        %v1056 = vunpack.c.l.b16 %v964
        %v1057 = vunpack.c.h.b16 %v964
        %v1058 = vunpack.c.l.b16 %v965
        %v1059 = vunpack.c.h.b16 %v965
        %v1060 = vunpack.c.l.b16 %v966
        %v1061 = vunpack.c.h.b16 %v966
        %v1062 = vunpack.c.l.b16 %v967
        %v1063 = vunpack.c.h.b16 %v967
        %v1064 = vunpack.c.l.b16 %v968
        %v1065 = vunpack.c.h.b16 %v968
        %v1066 = vunpack.c.l.b16 %v969
        %v1067 = vunpack.c.h.b16 %v969
        %v1068 = vunpack.c.l.b16 %v970
        %v1069 = vunpack.c.h.b16 %v970
        %v1070 = vunpack.c.l.b16 %v971
        %v1071 = vunpack.c.h.b16 %v971
        %v1072 = vunpack.c.l.b16 %v972
        %v1073 = vunpack.c.h.b16 %v972
        %v1074 = vunpack.c.l.b16 %v973
        %v1075 = vunpack.c.h.b16 %v973
        %v1076 = vunpack.c.l.b16 %v974
        %v1077 = vunpack.c.h.b16 %v974
        %v1078 = vunpack.c.l.b16 %v975
        %v1079 = vunpack.c.h.b16 %v975
        %v1080 = vunpack.c.l.b16 %v976
        %v1081 = vunpack.c.h.b16 %v976
        %v1082 = vunpack.c.l.b16 %v977
        %v1083 = vunpack.c.h.b16 %v977
        %v1084 = vunpack.c.l.b16 %v978
        %v1085 = vunpack.c.h.b16 %v978
        %v1086 = vunpack.c.l.b16 %v979
        %v1087 = vunpack.c.h.b16 %v979
        %v1088 = vunpack.c.l.b16 %v980
        %v1089 = vunpack.c.h.b16 %v980
        %v1090 = vunpack.c.l.b16 %v981
        %v1091 = vunpack.c.h.b16 %v981
        %v1092 = vunpack.c.l.b16 %v982
        %v1093 = vunpack.c.h.b16 %v982
        %v1094 = vunpack.c.l.b16 %v983
        %v1095 = vunpack.c.h.b16 %v983
        %v1096 = vunpack.c.l.b16 %v984
        %v1097 = vunpack.c.h.b16 %v984
        %v1098 = vunpack.c.l.b16 %v985
        %v1099 = vunpack.c.h.b16 %v985
        %v1100 = vunpack.c.l.b16 %v986
        %v1101 = vunpack.c.h.b16 %v986
        %v1102 = vunpack.c.l.b16 %v987
        %v1103 = vunpack.c.h.b16 %v987
        %v1104 = vunpack.c.l.b16 %v988
        %v1105 = vunpack.c.h.b16 %v988
        %v1106 = vunpack.c.l.b16 %v989
        %v1107 = vunpack.c.h.b16 %v989
        %v1108 = vpack.c.b16 %v1048, %v1044
        %v1109 = vpack.c.b16 %v1049, %v1045
        %v1110 = vpack.c.b16 %v1050, %v1046
        %v1111 = vpack.c.b16 %v1051, %v1047
        %v1112 = vpack.c.b16 %v1056, %v1052
        %v1113 = vpack.c.b16 %v1057, %v1053
        %v1114 = vpack.c.b16 %v1058, %v1054
        %v1115 = vpack.c.b16 %v1059, %v1055
        %v1116 = vpack.c.b16 %v1064, %v1060
        %v1117 = vpack.c.b16 %v1065, %v1061
        %v1118 = vpack.c.b16 %v1066, %v1062
        %v1119 = vpack.c.b16 %v1067, %v1063
        %v1120 = vpack.c.b16 %v1072, %v1068
        %v1121 = vpack.c.b16 %v1073, %v1069
        %v1122 = vpack.c.b16 %v1074, %v1070
        %v1123 = vpack.c.b16 %v1075, %v1071
        %v1124 = vpack.c.b16 %v1080, %v1076
        %v1125 = vpack.c.b16 %v1081, %v1077
        %v1126 = vpack.c.b16 %v1082, %v1078
        %v1127 = vpack.c.b16 %v1083, %v1079
        %v1128 = vpack.c.b16 %v1088, %v1084
        %v1129 = vpack.c.b16 %v1089, %v1085
        %v1130 = vpack.c.b16 %v1090, %v1086
        %v1131 = vpack.c.b16 %v1091, %v1087
        %v1132 = vpack.c.b16 %v1096, %v1092
        %v1133 = vpack.c.b16 %v1097, %v1093
        %v1134 = vpack.c.b16 %v1098, %v1094
        %v1135 = vpack.c.b16 %v1099, %v1095
        %v1136 = vpack.c.b16 %v1104, %v1100
        %v1137 = vpack.c.b16 %v1105, %v1101
        %v1138 = vpack.c.b16 %v1106, %v1102
        %v1139 = vpack.c.b16 %v1107, %v1103
        %1172 = vmatprep.subr.bf16.mxu0 %v1109
        %1173 = vmatpush1.bf16.msra.mxu0 %v1108
        %1174 = vmatprep.subr.bf16.mxu0 %v1113
        %1175 = vmatpush1.bf16.msra.mxu0 %v1112
        %1176 = vmatprep.subr.bf16.mxu0 %v1117
        %1177 = vmatpush1.bf16.msra.mxu0 %v1116
        %1178 = vmatprep.subr.bf16.mxu0 %v1121
        %1179 = vmatpush1.bf16.msra.mxu0 %v1120
        %1180 = vmatprep.subr.bf16.mxu0 %v1125
        %1181 = vmatpush1.bf16.msra.mxu0 %v1124
        %1182 = vmatprep.subr.bf16.mxu0 %v1129
        %1183 = vmatpush1.bf16.msra.mxu0 %v1128
        %1184 = vmatprep.subr.bf16.mxu0 %v1133
        %1185 = vmatpush1.bf16.msra.mxu0 %v1132
        %1186 = vmatprep.subr.bf16.mxu0 %v1137
        %1187 = vmatpush1.bf16.msra.mxu0 %v1136
        %1188 = vmatprep.subr.bf16.mxu0 0
        %1189 = vmatpush1.bf16.msra.mxu0 0
        %1190 = vmatprep.subr.bf16.mxu0 0
        %1191 = vmatpush1.bf16.msra.mxu0 0
        %1192 = vmatprep.subr.bf16.mxu0 0
        %1193 = vmatpush1.bf16.msra.mxu0 0
        %1194 = vmatprep.subr.bf16.mxu0 0
        %1195 = vmatpush1.bf16.msra.mxu0 0
        %1196 = vmatprep.subr.bf16.mxu0 0
        %1197 = vmatpush1.bf16.msra.mxu0 0
        %1198 = vmatprep.subr.bf16.mxu0 0
        %1199 = vmatpush1.bf16.msra.mxu0 0
        %1200 = vmatprep.subr.bf16.mxu0 0
        %1201 = vmatpush1.bf16.msra.mxu0 0
        %1202 = vmatprep.subr.bf16.mxu0 0
        %1203 = vmatpush1.bf16.msra.mxu0 0
        %1204 = vmatprep.mubr.bf16.mxu0 0
        %1205 = vmatmul.mubr.bf16.gmra.mrb[0].mxu0 %v950
        %v1206 = vpop.f32.mrb[0].mxu0
        %v1207 = vadd.f32 %v995, %v1206
        %v1208 = vpop.f32.mrb[0].mxu0
        %v1209 = vadd.f32 %v999, %v1208
        %v1210 = vpop.f32.mrb[0].mxu0
        %v1211 = vadd.f32 %v995, %v1210
        %v1212 = vpop.f32.mrb[0].mxu0
        %v1213 = vadd.f32 %v999, %v1212
        %1214 = vmatprep.mubr.bf16.mxu0 0
        %1215 = vmatmul.mubr.bf16.gmra.mrb[0].mxu0 %v951
        %v1216 = vpop.f32.mrb[0].mxu0
        %v1217 = vadd.f32 %v995, %v1216
        %v1218 = vpop.f32.mrb[0].mxu0
        %v1219 = vadd.f32 %v999, %v1218
        %v1220 = vpop.f32.mrb[0].mxu0
        %v1221 = vadd.f32 %v995, %v1220
        %v1222 = vpop.f32.mrb[0].mxu0
        %v1223 = vadd.f32 %v999, %v1222
        %1224 = vmatprep.mubr.bf16.mxu0 0
        %1225 = vmatmul.mubr.bf16.gmra.mrb[0].mxu0 %v952
        %v1226 = vpop.f32.mrb[0].mxu0
        %v1227 = vadd.f32 %v995, %v1226
        %v1228 = vpop.f32.mrb[0].mxu0
        %v1229 = vadd.f32 %v999, %v1228
        %v1230 = vpop.f32.mrb[0].mxu0
        %v1231 = vadd.f32 %v995, %v1230
        %v1232 = vpop.f32.mrb[0].mxu0
        %v1233 = vadd.f32 %v999, %v1232
        %1234 = vmatprep.mubr.bf16.mxu0 0
        %1235 = vmatmul.mubr.bf16.gmra.mrb[0].mxu0 %v953
        %v1236 = vpop.f32.mrb[0].mxu0
        %v1237 = vadd.f32 %v995, %v1236
        %v1238 = vpop.f32.mrb[0].mxu0
        %v1239 = vadd.f32 %v999, %v1238
        %v1240 = vpop.f32.mrb[0].mxu0
        %v1241 = vadd.f32 %v995, %v1240
        %v1242 = vpop.f32.mrb[0].mxu0
        %v1243 = vadd.f32 %v999, %v1242
        %1244 = vmatprep.mubr.bf16.mxu0 0
        %1245 = vmatmul.mubr.bf16.gmra.mrb[0].mxu0 %v954
        %v1246 = vpop.f32.mrb[0].mxu0
        %v1247 = vadd.f32 %v995, %v1246
        %v1248 = vpop.f32.mrb[0].mxu0
        %v1249 = vadd.f32 %v999, %v1248
        %v1250 = vpop.f32.mrb[0].mxu0
        %v1251 = vadd.f32 %v995, %v1250
        %v1252 = vpop.f32.mrb[0].mxu0
        %v1253 = vadd.f32 %v999, %v1252
        %1254 = vmatprep.mubr.bf16.mxu0 0
        %1255 = vmatmul.mubr.bf16.gmra.mrb[0].mxu0 %v955
        %v1256 = vpop.f32.mrb[0].mxu0
        %v1257 = vadd.f32 %v995, %v1256
        %v1258 = vpop.f32.mrb[0].mxu0
        %v1259 = vadd.f32 %v999, %v1258
        %v1260 = vpop.f32.mrb[0].mxu0
        %v1261 = vadd.f32 %v995, %v1260
        %v1262 = vpop.f32.mrb[0].mxu0
        %v1263 = vadd.f32 %v999, %v1262
        %1264 = vmatprep.mubr.bf16.mxu0 0
        %1265 = vmatmul.mubr.bf16.gmra.mrb[0].mxu0 %v956
        %v1266 = vpop.f32.mrb[0].mxu0
        %v1267 = vadd.f32 %v995, %v1266
        %v1268 = vpop.f32.mrb[0].mxu0
        %v1269 = vadd.f32 %v999, %v1268
        %v1270 = vpop.f32.mrb[0].mxu0
        %v1271 = vadd.f32 %v995, %v1270
        %v1272 = vpop.f32.mrb[0].mxu0
        %v1273 = vadd.f32 %v999, %v1272
        %1274 = vmatprep.mubr.bf16.mxu0 0
        %1275 = vmatmul.mubr.bf16.gmra.mrb[0].mxu0 %v957
        %v1276 = vpop.f32.mrb[0].mxu0
        %v1277 = vadd.f32 %v995, %v1276
        %v1278 = vpop.f32.mrb[0].mxu0
        %v1279 = vadd.f32 %v999, %v1278
        %v1280 = vpop.f32.mrb[0].mxu0
        %v1281 = vadd.f32 %v995, %v1280
        %v1282 = vpop.f32.mrb[0].mxu0
        %v1283 = vadd.f32 %v999, %v1282
        %1284 = vdwg.mxu0
        %1285 = vmatprep.subr.bf16.mxu0 %v1111
        %1286 = vmatpush1.bf16.msra.mxu0 %v1110
        %1287 = vmatprep.subr.bf16.mxu0 %v1115
        %1288 = vmatpush1.bf16.msra.mxu0 %v1114
        %1289 = vmatprep.subr.bf16.mxu0 %v1119
        %1290 = vmatpush1.bf16.msra.mxu0 %v1118
        %1291 = vmatprep.subr.bf16.mxu0 %v1123
        %1292 = vmatpush1.bf16.msra.mxu0 %v1122
        %1293 = vmatprep.subr.bf16.mxu0 %v1127
        %1294 = vmatpush1.bf16.msra.mxu0 %v1126
        %1295 = vmatprep.subr.bf16.mxu0 %v1131
        %1296 = vmatpush1.bf16.msra.mxu0 %v1130
        %1297 = vmatprep.subr.bf16.mxu0 %v1135
        %1298 = vmatpush1.bf16.msra.mxu0 %v1134
        %1299 = vmatprep.subr.bf16.mxu0 %v1139
        %1300 = vmatpush1.bf16.msra.mxu0 %v1138
        %1301 = vmatprep.subr.bf16.mxu0 0
        %1302 = vmatpush1.bf16.msra.mxu0 0
        %1303 = vmatprep.subr.bf16.mxu0 0
        %1304 = vmatpush1.bf16.msra.mxu0 0
        %1305 = vmatprep.subr.bf16.mxu0 0
        %1306 = vmatpush1.bf16.msra.mxu0 0
        %1307 = vmatprep.subr.bf16.mxu0 0
        %1308 = vmatpush1.bf16.msra.mxu0 0
        %1309 = vmatprep.subr.bf16.mxu0 0
        %1310 = vmatpush1.bf16.msra.mxu0 0
        %1311 = vmatprep.subr.bf16.mxu0 0
        %1312 = vmatpush1.bf16.msra.mxu0 0
        %1313 = vmatprep.subr.bf16.mxu0 0
        %1314 = vmatpush1.bf16.msra.mxu0 0
        %1315 = vmatprep.subr.bf16.mxu0 0
        %1316 = vmatpush1.bf16.msra.mxu0 0
        %1317 = vmatprep.mubr.bf16.mxu0 0
        %1318 = vmatmul.mubr.bf16.gmra.mrb[0].mxu0 %v950
        %v1319 = vpop.f32.mrb[0].mxu0
        %v1320 = vadd.f32 %v1003, %v1319
        %v1321 = vpop.f32.mrb[0].mxu0
        %v1322 = vadd.f32 %v1007, %v1321
        %v1323 = vpop.f32.mrb[0].mxu0
        %v1324 = vadd.f32 %v1003, %v1323
        %v1325 = vpop.f32.mrb[0].mxu0
        %v1326 = vadd.f32 %v1007, %v1325
        %1327 = vmatprep.mubr.bf16.mxu0 0
        %1328 = vmatmul.mubr.bf16.gmra.mrb[0].mxu0 %v951
        %v1329 = vpop.f32.mrb[0].mxu0
        %v1330 = vadd.f32 %v1003, %v1329
        %v1331 = vpop.f32.mrb[0].mxu0
        %v1332 = vadd.f32 %v1007, %v1331
        %v1333 = vpop.f32.mrb[0].mxu0
        %v1334 = vadd.f32 %v1003, %v1333
        %v1335 = vpop.f32.mrb[0].mxu0
        %v1336 = vadd.f32 %v1007, %v1335
        %1337 = vmatprep.mubr.bf16.mxu0 0
        %1338 = vmatmul.mubr.bf16.gmra.mrb[0].mxu0 %v952
        %v1339 = vpop.f32.mrb[0].mxu0
        %v1340 = vadd.f32 %v1003, %v1339
        %v1341 = vpop.f32.mrb[0].mxu0
        %v1342 = vadd.f32 %v1007, %v1341
        %v1343 = vpop.f32.mrb[0].mxu0
        %v1344 = vadd.f32 %v1003, %v1343
        %v1345 = vpop.f32.mrb[0].mxu0
        %v1346 = vadd.f32 %v1007, %v1345
        %1347 = vmatprep.mubr.bf16.mxu0 0
        %1348 = vmatmul.mubr.bf16.gmra.mrb[0].mxu0 %v953
        %v1349 = vpop.f32.mrb[0].mxu0
        %v1350 = vadd.f32 %v1003, %v1349
        %v1351 = vpop.f32.mrb[0].mxu0
        %v1352 = vadd.f32 %v1007, %v1351
        %v1353 = vpop.f32.mrb[0].mxu0
        %v1354 = vadd.f32 %v1003, %v1353
        %v1355 = vpop.f32.mrb[0].mxu0
        %v1356 = vadd.f32 %v1007, %v1355
        %1357 = vmatprep.mubr.bf16.mxu0 0
        %1358 = vmatmul.mubr.bf16.gmra.mrb[0].mxu0 %v954
        %v1359 = vpop.f32.mrb[0].mxu0
        %v1360 = vadd.f32 %v1003, %v1359
        %v1361 = vpop.f32.mrb[0].mxu0
        %v1362 = vadd.f32 %v1007, %v1361
        %v1363 = vpop.f32.mrb[0].mxu0
        %v1364 = vadd.f32 %v1003, %v1363
        %v1365 = vpop.f32.mrb[0].mxu0
        %v1366 = vadd.f32 %v1007, %v1365
        %1367 = vmatprep.mubr.bf16.mxu0 0
        %1368 = vmatmul.mubr.bf16.gmra.mrb[0].mxu0 %v955
        %v1369 = vpop.f32.mrb[0].mxu0
        %v1370 = vadd.f32 %v1003, %v1369
        %v1371 = vpop.f32.mrb[0].mxu0
        %v1372 = vadd.f32 %v1007, %v1371
        %v1373 = vpop.f32.mrb[0].mxu0
        %v1374 = vadd.f32 %v1003, %v1373
        %v1375 = vpop.f32.mrb[0].mxu0
        %v1376 = vadd.f32 %v1007, %v1375
        %1377 = vmatprep.mubr.bf16.mxu0 0
        %1378 = vmatmul.mubr.bf16.gmra.mrb[0].mxu0 %v956
        %v1379 = vpop.f32.mrb[0].mxu0
        %v1380 = vadd.f32 %v1003, %v1379
        %v1381 = vpop.f32.mrb[0].mxu0
        %v1382 = vadd.f32 %v1007, %v1381
        %v1383 = vpop.f32.mrb[0].mxu0
        %v1384 = vadd.f32 %v1003, %v1383
        %v1385 = vpop.f32.mrb[0].mxu0
        %v1386 = vadd.f32 %v1007, %v1385
        %1387 = vmatprep.mubr.bf16.mxu0 0
        %1388 = vmatmul.mubr.bf16.gmra.mrb[0].mxu0 %v957
        %v1389 = vpop.f32.mrb[0].mxu0
        %v1390 = vadd.f32 %v1003, %v1389
        %v1391 = vpop.f32.mrb[0].mxu0
        %v1392 = vadd.f32 %v1007, %v1391
        %v1393 = vpop.f32.mrb[0].mxu0
        %v1394 = vadd.f32 %v1003, %v1393
        %v1395 = vpop.f32.mrb[0].mxu0
        %v1396 = vadd.f32 %v1007, %v1395
        %1397 = vdwg.mxu0
        %v1398 = vsub.f32 0.0, %v1207
        %v1399 = vsub.f32 0.0, %v1209
        %v1400 = vsub.f32 0.0, %v1320
        %v1401 = vsub.f32 0.0, %v1322
        %v1402 = vsub.f32 0.0, %v1211
        %v1403 = vsub.f32 0.0, %v1213
        %v1404 = vsub.f32 0.0, %v1324
        %v1405 = vsub.f32 0.0, %v1326
        %v1406 = vsub.f32 0.0, %v1217
        %v1407 = vsub.f32 0.0, %v1219
        %v1408 = vsub.f32 0.0, %v1330
        %v1409 = vsub.f32 0.0, %v1332
        %v1410 = vsub.f32 0.0, %v1221
        %v1411 = vsub.f32 0.0, %v1223
        %v1412 = vsub.f32 0.0, %v1334
        %v1413 = vsub.f32 0.0, %v1336
        %v1414 = vsub.f32 0.0, %v1227
        %v1415 = vsub.f32 0.0, %v1229
        %v1416 = vsub.f32 0.0, %v1340
        %v1417 = vsub.f32 0.0, %v1342
        %v1418 = vsub.f32 0.0, %v1231
        %v1419 = vsub.f32 0.0, %v1233
        %v1420 = vsub.f32 0.0, %v1344
        %v1421 = vsub.f32 0.0, %v1346
        %v1422 = vsub.f32 0.0, %v1237
        %v1423 = vsub.f32 0.0, %v1239
        %v1424 = vsub.f32 0.0, %v1350
        %v1425 = vsub.f32 0.0, %v1352
        %v1426 = vsub.f32 0.0, %v1241
        %v1427 = vsub.f32 0.0, %v1243
        %v1428 = vsub.f32 0.0, %v1354
        %v1429 = vsub.f32 0.0, %v1356
        %v1430 = vsub.f32 0.0, %v1247
        %v1431 = vsub.f32 0.0, %v1249
        %v1432 = vsub.f32 0.0, %v1360
        %v1433 = vsub.f32 0.0, %v1362
        %v1434 = vsub.f32 0.0, %v1251
        %v1435 = vsub.f32 0.0, %v1253
        %v1436 = vsub.f32 0.0, %v1364
        %v1437 = vsub.f32 0.0, %v1366
        %v1438 = vsub.f32 0.0, %v1257
        %v1439 = vsub.f32 0.0, %v1259
        %v1440 = vsub.f32 0.0, %v1370
        %v1441 = vsub.f32 0.0, %v1372
        %v1442 = vsub.f32 0.0, %v1261
        %v1443 = vsub.f32 0.0, %v1263
        %v1444 = vsub.f32 0.0, %v1374
        %v1445 = vsub.f32 0.0, %v1376
        %v1446 = vsub.f32 0.0, %v1267
        %v1447 = vsub.f32 0.0, %v1269
        %v1448 = vsub.f32 0.0, %v1380
        %v1449 = vsub.f32 0.0, %v1382
        %v1450 = vsub.f32 0.0, %v1271
        %v1451 = vsub.f32 0.0, %v1273
        %v1452 = vsub.f32 0.0, %v1384
        %v1453 = vsub.f32 0.0, %v1386
        %v1454 = vsub.f32 0.0, %v1277
        %v1455 = vsub.f32 0.0, %v1279
        %v1456 = vsub.f32 0.0, %v1390
        %v1457 = vsub.f32 0.0, %v1392
        %v1458 = vsub.f32 0.0, %v1281
        %v1459 = vsub.f32 0.0, %v1283
        %v1460 = vsub.f32 0.0, %v1394
        %v1461 = vsub.f32 0.0, %v1396
        %v1462 = vmul.f32 %v1398, 1.442695
        %v1463 = vpow.pop %v1462
        %v1464 = vmul.f32 %v1399, 1.442695
        %v1465 = vpow.pop %v1464
        %v1466 = vmul.f32 %v1400, 1.442695
        %v1467 = vpow.pop %v1466
        %v1468 = vmul.f32 %v1401, 1.442695
        %v1469 = vpow.pop %v1468
        %v1470 = vmul.f32 %v1402, 1.442695
        %v1471 = vpow.pop %v1470
        %v1472 = vmul.f32 %v1403, 1.442695
        %v1473 = vpow.pop %v1472
        %v1474 = vmul.f32 %v1404, 1.442695
        %v1475 = vpow.pop %v1474
        %v1476 = vmul.f32 %v1405, 1.442695
        %v1477 = vpow.pop %v1476
        %v1478 = vmul.f32 %v1406, 1.442695
        %v1479 = vpow.pop %v1478
        %v1480 = vmul.f32 %v1407, 1.442695
        %v1481 = vpow.pop %v1480
        %v1482 = vmul.f32 %v1408, 1.442695
        %v1483 = vpow.pop %v1482
        %v1484 = vmul.f32 %v1409, 1.442695
        %v1485 = vpow.pop %v1484
        %v1486 = vmul.f32 %v1410, 1.442695
        %v1487 = vpow.pop %v1486
        %v1488 = vmul.f32 %v1411, 1.442695
        %v1489 = vpow.pop %v1488
        %v1490 = vmul.f32 %v1412, 1.442695
        %v1491 = vpow.pop %v1490
        %v1492 = vmul.f32 %v1413, 1.442695
        %v1493 = vpow.pop %v1492
        %v1494 = vmul.f32 %v1414, 1.442695
        %v1495 = vpow.pop %v1494
        %v1496 = vmul.f32 %v1415, 1.442695
        %v1497 = vpow.pop %v1496
        %v1498 = vmul.f32 %v1416, 1.442695
        %v1499 = vpow.pop %v1498
        %v1500 = vmul.f32 %v1417, 1.442695
        %v1501 = vpow.pop %v1500
        %v1502 = vmul.f32 %v1418, 1.442695
        %v1503 = vpow.pop %v1502
        %v1504 = vmul.f32 %v1419, 1.442695
        %v1505 = vpow.pop %v1504
        %v1506 = vmul.f32 %v1420, 1.442695
        %v1507 = vpow.pop %v1506
        %v1508 = vmul.f32 %v1421, 1.442695
        %v1509 = vpow.pop %v1508
        %v1510 = vmul.f32 %v1422, 1.442695
        %v1511 = vpow.pop %v1510
        %v1512 = vmul.f32 %v1423, 1.442695
        %v1513 = vpow.pop %v1512
        %v1514 = vmul.f32 %v1424, 1.442695
        %v1515 = vpow.pop %v1514
        %v1516 = vmul.f32 %v1425, 1.442695
        %v1517 = vpow.pop %v1516
        %v1518 = vmul.f32 %v1426, 1.442695
        %v1519 = vpow.pop %v1518
        %v1520 = vmul.f32 %v1427, 1.442695
        %v1521 = vpow.pop %v1520
        %v1522 = vmul.f32 %v1428, 1.442695
        %v1523 = vpow.pop %v1522
        %v1524 = vmul.f32 %v1429, 1.442695
        %v1525 = vpow.pop %v1524
        %v1526 = vmul.f32 %v1430, 1.442695
        %v1527 = vpow.pop %v1526
        %v1528 = vmul.f32 %v1431, 1.442695
        %v1529 = vpow.pop %v1528
        %v1530 = vmul.f32 %v1432, 1.442695
        %v1531 = vpow.pop %v1530
        %v1532 = vmul.f32 %v1433, 1.442695
        %v1533 = vpow.pop %v1532
        %v1534 = vmul.f32 %v1434, 1.442695
        %v1535 = vpow.pop %v1534
        %v1536 = vmul.f32 %v1435, 1.442695
        %v1537 = vpow.pop %v1536
        %v1538 = vmul.f32 %v1436, 1.442695
        %v1539 = vpow.pop %v1538
        %v1540 = vmul.f32 %v1437, 1.442695
        %v1541 = vpow.pop %v1540
        %v1542 = vmul.f32 %v1438, 1.442695
        %v1543 = vpow.pop %v1542
        %v1544 = vmul.f32 %v1439, 1.442695
        %v1545 = vpow.pop %v1544
        %v1546 = vmul.f32 %v1440, 1.442695
        %v1547 = vpow.pop %v1546
        %v1548 = vmul.f32 %v1441, 1.442695
        %v1549 = vpow.pop %v1548
        %v1550 = vmul.f32 %v1442, 1.442695
        %v1551 = vpow.pop %v1550
        %v1552 = vmul.f32 %v1443, 1.442695
        %v1553 = vpow.pop %v1552
        %v1554 = vmul.f32 %v1444, 1.442695
        %v1555 = vpow.pop %v1554
        %v1556 = vmul.f32 %v1445, 1.442695
        %v1557 = vpow.pop %v1556
        %v1558 = vmul.f32 %v1446, 1.442695
        %v1559 = vpow.pop %v1558
        %v1560 = vmul.f32 %v1447, 1.442695
        %v1561 = vpow.pop %v1560
        %v1562 = vmul.f32 %v1448, 1.442695
        %v1563 = vpow.pop %v1562
        %v1564 = vmul.f32 %v1449, 1.442695
        %v1565 = vpow.pop %v1564
        %v1566 = vmul.f32 %v1450, 1.442695
        %v1567 = vpow.pop %v1566
        %v1568 = vmul.f32 %v1451, 1.442695
        %v1569 = vpow.pop %v1568
        %v1570 = vmul.f32 %v1452, 1.442695
        %v1571 = vpow.pop %v1570
        %v1572 = vmul.f32 %v1453, 1.442695
        %v1573 = vpow.pop %v1572
        %v1574 = vmul.f32 %v1454, 1.442695
        %v1575 = vpow.pop %v1574
        %v1576 = vmul.f32 %v1455, 1.442695
        %v1577 = vpow.pop %v1576
        %v1578 = vmul.f32 %v1456, 1.442695
        %v1579 = vpow.pop %v1578
        %v1580 = vmul.f32 %v1457, 1.442695
        %v1581 = vpow.pop %v1580
        %v1582 = vmul.f32 %v1458, 1.442695
        %v1583 = vpow.pop %v1582
        %v1584 = vmul.f32 %v1459, 1.442695
        %v1585 = vpow.pop %v1584
        %v1586 = vmul.f32 %v1460, 1.442695
        %v1587 = vpow.pop %v1586
        %v1588 = vmul.f32 %v1461, 1.442695
        %v1589 = vpow.pop %v1588
        %v1590 = vadd.f32 %v1463, 1.0
        %v1591 = vadd.f32 %v1465, 1.0
        %v1592 = vadd.f32 %v1467, 1.0
        %v1593 = vadd.f32 %v1469, 1.0
        %v1594 = vadd.f32 %v1471, 1.0
        %v1595 = vadd.f32 %v1473, 1.0
        %v1596 = vadd.f32 %v1475, 1.0
        %v1597 = vadd.f32 %v1477, 1.0
        %v1598 = vadd.f32 %v1479, 1.0
        %v1599 = vadd.f32 %v1481, 1.0
        %v1600 = vadd.f32 %v1483, 1.0
        %v1601 = vadd.f32 %v1485, 1.0
        %v1602 = vadd.f32 %v1487, 1.0
        %v1603 = vadd.f32 %v1489, 1.0
        %v1604 = vadd.f32 %v1491, 1.0
        %v1605 = vadd.f32 %v1493, 1.0
        %v1606 = vadd.f32 %v1495, 1.0
        %v1607 = vadd.f32 %v1497, 1.0
        %v1608 = vadd.f32 %v1499, 1.0
        %v1609 = vadd.f32 %v1501, 1.0
        %v1610 = vadd.f32 %v1503, 1.0
        %v1611 = vadd.f32 %v1505, 1.0
        %v1612 = vadd.f32 %v1507, 1.0
        %v1613 = vadd.f32 %v1509, 1.0
        %v1614 = vadd.f32 %v1511, 1.0
        %v1615 = vadd.f32 %v1513, 1.0
        %v1616 = vadd.f32 %v1515, 1.0
        %v1617 = vadd.f32 %v1517, 1.0
        %v1618 = vadd.f32 %v1519, 1.0
        %v1619 = vadd.f32 %v1521, 1.0
        %v1620 = vadd.f32 %v1523, 1.0
        %v1621 = vadd.f32 %v1525, 1.0
        %v1622 = vadd.f32 %v1527, 1.0
        %v1623 = vadd.f32 %v1529, 1.0
        %v1624 = vadd.f32 %v1531, 1.0
        %v1625 = vadd.f32 %v1533, 1.0
        %v1626 = vadd.f32 %v1535, 1.0
        %v1627 = vadd.f32 %v1537, 1.0
        %v1628 = vadd.f32 %v1539, 1.0
        %v1629 = vadd.f32 %v1541, 1.0
        %v1630 = vadd.f32 %v1543, 1.0
        %v1631 = vadd.f32 %v1545, 1.0
        %v1632 = vadd.f32 %v1547, 1.0
        %v1633 = vadd.f32 %v1549, 1.0
        %v1634 = vadd.f32 %v1551, 1.0
        %v1635 = vadd.f32 %v1553, 1.0
        %v1636 = vadd.f32 %v1555, 1.0
        %v1637 = vadd.f32 %v1557, 1.0
        %v1638 = vadd.f32 %v1559, 1.0
        %v1639 = vadd.f32 %v1561, 1.0
        %v1640 = vadd.f32 %v1563, 1.0
        %v1641 = vadd.f32 %v1565, 1.0
        %v1642 = vadd.f32 %v1567, 1.0
        %v1643 = vadd.f32 %v1569, 1.0
        %v1644 = vadd.f32 %v1571, 1.0
        %v1645 = vadd.f32 %v1573, 1.0
        %v1646 = vadd.f32 %v1575, 1.0
        %v1647 = vadd.f32 %v1577, 1.0
        %v1648 = vadd.f32 %v1579, 1.0
        %v1649 = vadd.f32 %v1581, 1.0
        %v1650 = vadd.f32 %v1583, 1.0
        %v1651 = vadd.f32 %v1585, 1.0
        %v1652 = vadd.f32 %v1587, 1.0
        %v1653 = vadd.f32 %v1589, 1.0
        %v1654 = vrcp.pop %v1590
        %v1655 = vrcp.pop %v1591
        %v1656 = vrcp.pop %v1592
        %v1657 = vrcp.pop %v1593
        %v1658 = vrcp.pop %v1594
        %v1659 = vrcp.pop %v1595
        %v1660 = vrcp.pop %v1596
        %v1661 = vrcp.pop %v1597
        %v1662 = vrcp.pop %v1598
        %v1663 = vrcp.pop %v1599
        %v1664 = vrcp.pop %v1600
        %v1665 = vrcp.pop %v1601
        %v1666 = vrcp.pop %v1602
        %v1667 = vrcp.pop %v1603
        %v1668 = vrcp.pop %v1604
        %v1669 = vrcp.pop %v1605
        %v1670 = vrcp.pop %v1606
        %v1671 = vrcp.pop %v1607
        %v1672 = vrcp.pop %v1608
        %v1673 = vrcp.pop %v1609
        %v1674 = vrcp.pop %v1610
        %v1675 = vrcp.pop %v1611
        %v1676 = vrcp.pop %v1612
        %v1677 = vrcp.pop %v1613
        %v1678 = vrcp.pop %v1614
        %v1679 = vrcp.pop %v1615
        %v1680 = vrcp.pop %v1616
        %v1681 = vrcp.pop %v1617
        %v1682 = vrcp.pop %v1618
        %v1683 = vrcp.pop %v1619
        %v1684 = vrcp.pop %v1620
        %v1685 = vrcp.pop %v1621
        %v1686 = vrcp.pop %v1622
        %v1687 = vrcp.pop %v1623
        %v1688 = vrcp.pop %v1624
        %v1689 = vrcp.pop %v1625
        %v1690 = vrcp.pop %v1626
        %v1691 = vrcp.pop %v1627
        %v1692 = vrcp.pop %v1628
        %v1693 = vrcp.pop %v1629
        %v1694 = vrcp.pop %v1630
        %v1695 = vrcp.pop %v1631
        %v1696 = vrcp.pop %v1632
        %v1697 = vrcp.pop %v1633
        %v1698 = vrcp.pop %v1634
        %v1699 = vrcp.pop %v1635
        %v1700 = vrcp.pop %v1636
        %v1701 = vrcp.pop %v1637
        %v1702 = vrcp.pop %v1638
        %v1703 = vrcp.pop %v1639
        %v1704 = vrcp.pop %v1640
        %v1705 = vrcp.pop %v1641
        %v1706 = vrcp.pop %v1642
        %v1707 = vrcp.pop %v1643
        %v1708 = vrcp.pop %v1644
        %v1709 = vrcp.pop %v1645
        %v1710 = vrcp.pop %v1646
        %v1711 = vrcp.pop %v1647
        %v1712 = vrcp.pop %v1648
        %v1713 = vrcp.pop %v1649
        %v1714 = vrcp.pop %v1650
        %v1715 = vrcp.pop %v1651
        %v1716 = vrcp.pop %v1652
        %v1717 = vrcp.pop %v1653
        %1718 = vst [vmem:[%s297] sm:$0xff] %v1654
        %1719 = vst [vmem:[%s297 + $0x8] sm:$0xff] %v1655
        %1720 = vst [vmem:[%s297 + $0x10] sm:$0xff] %v1656
        %1721 = vst [vmem:[%s297 + $0x18] sm:$0xff] %v1657
        %1722 = vst [vmem:[%s297 + $0x20] sm:$0xff] %v1658
        %1723 = vst [vmem:[%s297 + $0x28] sm:$0xff] %v1659
        %1724 = vst [vmem:[%s297 + $0x30] sm:$0xff] %v1660
        %1725 = vst [vmem:[%s297 + $0x38] sm:$0xff] %v1661
        %1726 = vst [vmem:[%s297 + $0x40] sm:$0xff] %v1662
        %1727 = vst [vmem:[%s297 + $0x48] sm:$0xff] %v1663
        %1728 = vst [vmem:[%s297 + $0x50] sm:$0xff] %v1664
        %1729 = vst [vmem:[%s297 + $0x58] sm:$0xff] %v1665
        %1730 = vst [vmem:[%s297 + $0x60] sm:$0xff] %v1666
        %1731 = vst [vmem:[%s297 + $0x68] sm:$0xff] %v1667
        %1732 = vst [vmem:[%s297 + $0x70] sm:$0xff] %v1668
        %1733 = vst [vmem:[%s297 + $0x78] sm:$0xff] %v1669
        %1734 = vst [vmem:[%s297 + $0x80] sm:$0xff] %v1670
        %1735 = vst [vmem:[%s297 + $0x88] sm:$0xff] %v1671
        %1736 = vst [vmem:[%s297 + $0x90] sm:$0xff] %v1672
        %1737 = vst [vmem:[%s297 + $0x98] sm:$0xff] %v1673
        %1738 = vst [vmem:[%s297 + $0xa0] sm:$0xff] %v1674
        %1739 = vst [vmem:[%s297 + $0xa8] sm:$0xff] %v1675
        %1740 = vst [vmem:[%s297 + $0xb0] sm:$0xff] %v1676
        %1741 = vst [vmem:[%s297 + $0xb8] sm:$0xff] %v1677
        %1742 = vst [vmem:[%s297 + $0xc0] sm:$0xff] %v1678
        %1743 = vst [vmem:[%s297 + $0xc8] sm:$0xff] %v1679
        %1744 = vst [vmem:[%s297 + $0xd0] sm:$0xff] %v1680
        %1745 = vst [vmem:[%s297 + $0xd8] sm:$0xff] %v1681
        %1746 = vst [vmem:[%s297 + $0xe0] sm:$0xff] %v1682
        %1747 = vst [vmem:[%s297 + $0xe8] sm:$0xff] %v1683
        %1748 = vst [vmem:[%s297 + $0xf0] sm:$0xff] %v1684
        %1749 = vst [vmem:[%s297 + $0xf8] sm:$0xff] %v1685
        %1750 = vst [vmem:[%s297 + $0x100] sm:$0xff] %v1686
        %1751 = vst [vmem:[%s297 + $0x108] sm:$0xff] %v1687
        %1752 = vst [vmem:[%s297 + $0x110] sm:$0xff] %v1688
        %1753 = vst [vmem:[%s297 + $0x118] sm:$0xff] %v1689
        %1754 = vst [vmem:[%s297 + $0x120] sm:$0xff] %v1690
        %1755 = vst [vmem:[%s297 + $0x128] sm:$0xff] %v1691
        %1756 = vst [vmem:[%s297 + $0x130] sm:$0xff] %v1692
        %1757 = vst [vmem:[%s297 + $0x138] sm:$0xff] %v1693
        %1758 = vst [vmem:[%s297 + $0x140] sm:$0xff] %v1694
        %1759 = vst [vmem:[%s297 + $0x148] sm:$0xff] %v1695
        %1760 = vst [vmem:[%s297 + $0x150] sm:$0xff] %v1696
        %1761 = vst [vmem:[%s297 + $0x158] sm:$0xff] %v1697
        %1762 = vst [vmem:[%s297 + $0x160] sm:$0xff] %v1698
        %1763 = vst [vmem:[%s297 + $0x168] sm:$0xff] %v1699
        %1764 = vst [vmem:[%s297 + $0x170] sm:$0xff] %v1700
        %1765 = vst [vmem:[%s297 + $0x178] sm:$0xff] %v1701
        %1766 = vst [vmem:[%s297 + $0x180] sm:$0xff] %v1702
        %1767 = vst [vmem:[%s297 + $0x188] sm:$0xff] %v1703
        %1768 = vst [vmem:[%s297 + $0x190] sm:$0xff] %v1704
        %1769 = vst [vmem:[%s297 + $0x198] sm:$0xff] %v1705
        %1770 = vst [vmem:[%s297 + $0x1a0] sm:$0xff] %v1706
        %1771 = vst [vmem:[%s297 + $0x1a8] sm:$0xff] %v1707
        %1772 = vst [vmem:[%s297 + $0x1b0] sm:$0xff] %v1708
        %1773 = vst [vmem:[%s297 + $0x1b8] sm:$0xff] %v1709
        %1774 = vst [vmem:[%s297 + $0x1c0] sm:$0xff] %v1710
        %1775 = vst [vmem:[%s297 + $0x1c8] sm:$0xff] %v1711
        %1776 = vst [vmem:[%s297 + $0x1d0] sm:$0xff] %v1712
        %1777 = vst [vmem:[%s297 + $0x1d8] sm:$0xff] %v1713
        %1778 = vst [vmem:[%s297 + $0x1e0] sm:$0xff] %v1714
        %1779 = vst [vmem:[%s297 + $0x1e8] sm:$0xff] %v1715
        %1780 = vst [vmem:[%s297 + $0x1f0] sm:$0xff] %v1716
        %1781 = vst [vmem:[%s297 + $0x1f8] sm:$0xff] %v1717
        %s1782 = sand.u32 %s142, 1
        %s1783 = scalar_lea.sflag [#allocation4], %s1782
        %s1784 = sand.u32 %s142, 1
        %s1785 = smul.addr %s1784, 512
        %s1786 = scalar_lea.vmem [#allocation11], %s1785
        // Predicated region
        $region61: #{tpu_custom_call.1} parent=39 // pred_check
          %p1787 = pneg %p152
        $region62: #{tpu_custom_call.1} parent=39 // pred_check_branch
          %1789 = sbr.rel (%p1787) target = $region64
        $region63: #{tpu_custom_call.1} parent=39 // pred_region
          %s1790 = smul.u32 16, %s24
          %s1792 = ssub.s32 8192, 8192
          %1793 = vsyncadd %s1783, %s1792
          %s1794 = smul.addr %s1790, 4
          %s1795 = smul.addr %s1794, 128
          %s1796 = scalar_lea.hbm %s5, %s1795
          %s1797 = sshll.u32 %s1786, 4
          %s1798 = int_to_ptr.vmem [resolvable:$true] %s1797
          %1803 = dma.vmem_to_hbm [thread:$0]  %s1798, 8192, %s1796, %s1783, 512, 512, 32
        $region64: #{tpu_custom_call.1} parent=39 // pred_fallthru
          _
      $region40: #{tpu_custom_call.1} parent=5 // pred_fallthru
        _
      %p1804 = scmp.le.s32.totalorder 2, %s19
      // Predicated region
      $region65: #{tpu_custom_call.1} parent=5 // pred_check
        %p1805 = pneg %p1804
      $region66: #{tpu_custom_call.1} parent=5 // pred_check_branch
        %1807 = sbr.rel (%p1805) target = $region68
      $region67: #{tpu_custom_call.1} parent=5 // pred_region
        %s1808 = ssub.s32 %s19, 2
        // Predicated region
        $region69: #{tpu_custom_call.1} parent=67 // pred_check
          %p1809 = pneg %p158
        $region70: #{tpu_custom_call.1} parent=67 // pred_check_branch
          %1811 = sbr.rel (%p1809) target = $region72
        $region71: #{tpu_custom_call.1} parent=67 // pred_region
          %s1812 = sand.u32 %s143, 1
          %s1813 = scalar_lea.sflag [#allocation4], %s1812
          %s1814 = sand.u32 %s143, 1
          %s1815 = smul.addr %s1814, 512
          %s1816 = scalar_lea.vmem [#allocation11], %s1815
          %1817 = dma.done %s1813, 8192
        $region72: #{tpu_custom_call.1} parent=67 // pred_fallthru
          _
      $region68: #{tpu_custom_call.1} parent=5 // pred_fallthru
        _
    $region6: #{tpu_custom_call.1} parent=1 // loop_footer
      %s23 = sadd.s32 1, %s19
    $region7: #{tpu_custom_call.1} parent=1 // loop_footer_branch
      %18 = sbr.rel target = $region3
    $region8: #{tpu_custom_call.1} parent=1 // loop_exit
      _
    %1818 = vsyncpa [#allocation3], 1
    %s1819 = scalar_lea.sflag [#allocation3], 1
    %1820 = vsyncpa %s1819, 1
    %1821 = vsyncpa [#allocation6], 1
    %1822 = vsyncpa [#allocation9], 1
    %1823 = vsyncpa [#allocation4], 1
    %s1824 = scalar_lea.sflag [#allocation4], 1
    %1825 = vsyncpa %s1824, 1

</llo_original>
